<compile_context>
chip_gen: v5e
topology: v5e:2x2
jax: 0.10.0
libtpu: 0.0.40
codegen_flags: <defaults>
</compile_context>

<pallas_src>
import functools
from typing import NamedTuple

import jax
import jax.numpy as jnp
import numpy as np
from jax.experimental import pallas as pl
from jax.experimental.pallas import tpu as pltpu

LN_EPS = 1e-5                       # torch.nn.LayerNorm default eps
LANE = 128                          # pad feature dims to the TPU lane width
DEF_TM = 1024                       # dst-node tile (rows of A / output)
DEF_TK = 1024                       # src-node tile (reduction axis)
H_RESIDENT_BUDGET = 4 * 1024 * 1024 # bytes of bf16 (h * src_norm) kept VMEM-resident
VMEM_LIMIT = 48 * 1024 * 1024       # stays under v7x's 64 MiB physical VMEM per TC


def _round_up(n, m):
    return ((n + m - 1) // m) * m


def _pad2(x, rows, cols):
    return jnp.pad(x, ((0, rows - x.shape[0]), (0, cols - x.shape[1])))


class RelationPrep(NamedTuple):
    a_p: jax.Array        # (nd, ns) bf16 padded weighted adjacency (static graph)
    src_norm: jax.Array   # (n_src, 1) f32 structural out-degree^-1/2
    dstn: jax.Array       # (nd, 1) f32 structural in-degree^-1/2, padded
    w_p: jax.Array        # (fi, fo) f32 padded projection
    pack: jax.Array       # (4, fo) f32 = [bias; gamma; beta; valid-lane mask]
    n_dst: int
    n_src: int
    f_in: int
    f_out: int
    nd: int
    ns: int
    fi: int
    fo: int
    tm: int
    tk: int
    h_resident: bool


def _rgcn_relation_kernel(a_ref, h_ref, dstn_ref, w_ref, pack_ref, prev_ref,
                          o_ref, acc_ref, *, inv_f_out, tk, h_resident):
    """One (dst-tile i, src-tile k) grid step of a single relation's GraphConv.

    Streaming (every k):   acc += A[i,k] @ h_scaled[k]     (bf16 MXU, f32 acc)
    Finalize (k == last):  rst = (acc @ W) * dst_norm + b
                           out = prev + relu(layernorm(rst))
    """
    k = pl.program_id(1)

    @pl.when(k == 0)
    def _():
        acc_ref[...] = jnp.zeros_like(acc_ref)

    if h_resident:
        # h (already * src_norm, bf16) is fully resident; slice the k-th src chunk.
        start = pl.multiple_of(k * tk, tk)
        h_blk = h_ref[pl.ds(start, tk), :]
    else:
        h_blk = h_ref[...]
    acc_ref[...] += jnp.dot(a_ref[...], h_blk, preferred_element_type=jnp.float32)

    @pl.when(k == pl.num_programs(1) - 1)
    def _():
        b = pack_ref[0:1, :]
        gamma = pack_ref[1:2, :]
        beta = pack_ref[2:3, :]
        valid = pack_ref[3:4, :]          # 1.0 on real F_out lanes, 0.0 on padding

        # Aggregate-first: project after the reduction (cheap, once per dst tile).
        rst = jnp.dot(acc_ref[...], w_ref[...], preferred_element_type=jnp.float32)
        rst = rst * dstn_ref[...] + b     # padded lanes stay exactly 0

        # LayerNorm over the real F_out lanes only (padded lanes masked out).
        mu = jnp.sum(rst, axis=-1, keepdims=True) * inv_f_out
        diff = (rst - mu) * valid
        var = jnp.sum(diff * diff, axis=-1, keepdims=True) * inv_f_out
        ln = diff * jax.lax.rsqrt(var + LN_EPS) * gamma + beta   # padded lanes -> 0

        # Fused HeteroGraphConv(aggregate='sum'); prev is HBM-aliased to the output.
        o_ref[...] = prev_ref[...] + jnp.maximum(ln, 0.0)


def prepare_relation(adj_w, adj_mask, W, b, gamma, beta, *,
                     tm=DEF_TM, tk=DEF_TK, h_resident_budget=H_RESIDENT_BUDGET):
    """One-time per-relation preprocessing (static graph + params).

    Pads/casts the big adjacency to bf16 and computes the structural-degree norms
    exactly once, so the per-forward path never re-reads A outside the kernel."""
    n_dst, n_src = adj_w.shape
    f_in, f_out = W.shape

    # Clamp tiles for small graphs (256-granular padding keeps (8,128) tiling legal).
    tm = min(tm, _round_up(n_dst, 256))
    tk = min(tk, _round_up(n_src, 256))
    nd = _round_up(n_dst, tm)
    ns = _round_up(n_src, tk)
    fi = _round_up(f_in, LANE)
    fo = _round_up(f_out, LANE)

    # Unweighted degrees from the structural mask (zero-weight edges still count),
    # computed in f32 before any bf16 cast of A; clamped to >= 1 like DGL.
    mask = adj_mask.astype(jnp.float32)
    src_norm = jax.lax.rsqrt(jnp.maximum(jnp.sum(mask, axis=0), 1.0))   # (n_src,)
    dst_norm = jax.lax.rsqrt(jnp.maximum(jnp.sum(mask, axis=1), 1.0))   # (n_dst,)

    a_p = _pad2(adj_w.astype(jnp.float32), nd, ns).astype(jnp.bfloat16)
    dstn = jnp.pad(dst_norm, (0, nd - n_dst)).reshape(nd, 1).astype(jnp.float32)
    w_p = _pad2(W.astype(jnp.float32), fi, fo)
    valid = (jnp.arange(fo) < f_out).astype(jnp.float32)
    pack = jnp.stack([
        jnp.pad(b.astype(jnp.float32), (0, fo - f_out)),
        jnp.pad(gamma.astype(jnp.float32), (0, fo - f_out)),
        jnp.pad(beta.astype(jnp.float32), (0, fo - f_out)),
        valid,
    ])                                                    # (4, fo)

    h_resident = (ns * fi * 2) <= h_resident_budget       # bf16 bytes of scaled h

    return RelationPrep(a_p=a_p, src_norm=src_norm.reshape(n_src, 1), dstn=dstn,
                        w_p=w_p, pack=pack, n_dst=n_dst, n_src=n_src,
                        f_in=f_in, f_out=f_out, nd=nd, ns=ns, fi=fi, fo=fo,
                        tm=tm, tk=tk, h_resident=h_resident)


def rgcn_relation(prep, h_src, prev=None):
    """One relation's GraphConv(norm='both', edge weights) + LayerNorm + ReLU,
    accumulated in-kernel onto `prev` (the running HeteroGraphConv sum).

    Returns a padded (nd, fo) f32 array (prev's buffer is donated/aliased)."""
    # Per-forward: fold src normalization into the small feature matrix inside the
    # same pad/cast pass (one tiny HBM pass; the kernel then streams only A @ h).
    hs = h_src.astype(jnp.float32) * prep.src_norm
    h_p = _pad2(hs, prep.ns, prep.fi).astype(jnp.bfloat16)

    if prev is None:
        prev = jnp.zeros((prep.nd, prep.fo), jnp.float32)
    assert prev.shape == (prep.nd, prep.fo), (prev.shape, (prep.nd, prep.fo))

    grid = (prep.nd // prep.tm, prep.ns // prep.tk)
    kernel = functools.partial(_rgcn_relation_kernel,
                               inv_f_out=1.0 / float(prep.f_out),
                               tk=prep.tk, h_resident=prep.h_resident)

    if prep.h_resident:
        # Fully VMEM-resident (fetched once per relation; never re-streamed per i).
        h_spec = pl.BlockSpec((prep.ns, prep.fi), lambda i, k: (0, 0))
    else:
        # Fallback for huge graphs: k-tiled; large tm keeps the re-stream overhead
        # at ~fi/tm of the A traffic.
        h_spec = pl.BlockSpec((prep.tk, prep.fi), lambda i, k: (k, 0))

    return pl.pallas_call(
        kernel,
        out_shape=jax.ShapeDtypeStruct((prep.nd, prep.fo), jnp.float32),
        grid_spec=pltpu.PrefetchScalarGridSpec(
            num_scalar_prefetch=0,
            grid=grid,
            in_specs=[
                pl.BlockSpec((prep.tm, prep.tk), lambda i, k: (i, k)),   # A (bf16)
                h_spec,                                                   # h*src_norm
                pl.BlockSpec((prep.tm, 1), lambda i, k: (i, 0)),          # dst norm
                pl.BlockSpec((prep.fi, prep.fo), lambda i, k: (0, 0)),    # W
                pl.BlockSpec((4, prep.fo), lambda i, k: (0, 0)),          # b/gamma/beta/valid
                pl.BlockSpec((prep.tm, prep.fo), lambda i, k: (i, 0)),    # prev
            ],
            out_specs=pl.BlockSpec((prep.tm, prep.fo), lambda i, k: (i, 0)),
            scratch_shapes=[pltpu.VMEM((prep.tm, prep.fi), jnp.float32)],
        ),
        input_output_aliases={5: 0},   # prev HBM buffer reused as the output buffer
        compiler_params=pltpu.CompilerParams(
            dimension_semantics=("parallel", "arbitrary"),
            vmem_limit_bytes=VMEM_LIMIT,
        ),
    )(prep.a_p, h_p, prep.dstn, prep.w_p, prep.pack, prev)


def rgcn_layer_forward(canonical_e_types, preps, h, n_nodes, out_sizes):
    """HeteroGraphConv(aggregate='sum'): per-relation conv accumulated in-kernel."""
    out_pad = {}
    for (src, etype, dst) in canonical_e_types:
        out_pad[dst] = rgcn_relation(preps[etype], h[src], prev=out_pad.get(dst))
    return {dst: o[:n_nodes[dst], :out_sizes[dst]] for dst, o in out_pad.items()}


# ----------------------------- pure-JAX reference -----------------------------

def _reference_relation(adj_w, adj_mask, h, W, b, gamma, beta):
    mask = adj_mask.astype(jnp.float32)
    src_norm = jax.lax.rsqrt(jnp.maximum(jnp.sum(mask, axis=0), 1.0))
    dst_norm = jax.lax.rsqrt(jnp.maximum(jnp.sum(mask, axis=1), 1.0))
    # Mirror the kernel's bf16 quantization of A / (h * src_norm).
    a_q = adj_w.astype(jnp.bfloat16).astype(jnp.float32)
    hs = (h * src_norm[:, None]).astype(jnp.bfloat16).astype(jnp.float32)
    rst = ((a_q @ hs) @ W) * dst_norm[:, None] + b[None, :]
    mu = jnp.mean(rst, axis=-1, keepdims=True)
    var = jnp.mean((rst - mu) ** 2, axis=-1, keepdims=True)
    ln = (rst - mu) * jax.lax.rsqrt(var + LN_EPS) * gamma[None, :] + beta[None, :]
    return jnp.maximum(ln, 0.0)


def _reference_forward(canonical_e_types, adj_w, adj_mask, h, params):
    out = {}
    for (src, etype, dst) in canonical_e_types:
        W, b, gamma, beta = params[etype]
        r = _reference_relation(adj_w[etype], adj_mask[etype], h[src], W, b, gamma, beta)
        out[dst] = r if dst not in out else out[dst] + r
    return out


if __name__ == "__main__":
    key = jax.random.PRNGKey(0)

    # Small synthetic heterogeneous graph.
    n_nodes = {"user": 8, "item": 16}
    in_sizes = {"user": 16, "item": 32}
    out_sizes = {"user": 32, "item": 32}
    canonical_e_types = [
        ("user", "rates", "item"),
        ("item", "rated_by", "user"),
        ("user", "follows", "user"),
    ]

    # Node features.
    h = {}
    k = key
    for nt in sorted(n_nodes):
        k, sub = jax.random.split(k)
        h[nt] = jax.random.normal(sub, (n_nodes[nt], in_sizes[nt]), jnp.float32)

    # Per-relation parameters, structural masks, and weighted dense adjacency.
    params, adj_w, adj_mask = {}, {}, {}
    for (src, etype, dst) in canonical_e_types:
        k, k1, k2, k3, k4, k5, k6 = jax.random.split(k, 7)
        fin, fout = in_sizes[src], out_sizes[dst]
        W = jax.random.normal(k1, (fin, fout), jnp.float32) / jnp.sqrt(jnp.float32(fin))
        b = 0.1 * jax.random.normal(k4, (fout,), jnp.float32)
        gamma = 1.0 + 0.1 * jax.random.normal(k5, (fout,), jnp.float32)
        beta = 0.1 * jax.random.normal(k6, (fout,), jnp.float32)
        params[etype] = (W, b, gamma, beta)

        m = (jax.random.uniform(k2, (n_nodes[dst], n_nodes[src])) < 0.5).astype(jnp.float32)
        ew = jax.random.uniform(k3, (n_nodes[dst], n_nodes[src]), minval=0.1, maxval=1.0)
        if etype == "rates":
            # A zero-weight edge: exists in the graph (counts for degrees) but weight 0.
            m = m.at[0, 0].set(1.0)
            ew = ew.at[0, 0].set(0.0)
        adj_mask[etype] = m
        adj_w[etype] = m * ew

    # One-time per-graph preprocessing (A pad/cast + structural degrees + params).
    preps = {}
    for (src, etype, dst) in canonical_e_types:
        W, b, gamma, beta = params[etype]
        preps[etype] = prepare_relation(adj_w[etype], adj_mask[etype], W, b, gamma, beta)

    out = rgcn_layer_forward(canonical_e_types, preps, h, n_nodes, out_sizes)
    ref = _reference_forward(canonical_e_types, adj_w, adj_mask, h, params)

    for nt in sorted(out):
        jax.block_until_ready(out[nt])
        assert out[nt].shape == (n_nodes[nt], out_sizes[nt])
        assert bool(jnp.all(jnp.isfinite(out[nt])))
        np.testing.assert_allclose(np.asarray(out[nt]), np.asarray(ref[nt]),
                                   rtol=2e-2, atol=2e-2)

    print("KERNEL_OK")
</pallas_src>

<mosaic_0001>
module attributes {stable_mosaic.version = 11 : i64} {
  func.func @_rgcn_relation_kernel(%arg0: i32, %arg1: i32, %arg2: memref<256x256xbf16, #tpu.memory_space<vmem>>, %arg3: memref<256x128xbf16, #tpu.memory_space<vmem>>, %arg4: memref<256x1xf32, #tpu.memory_space<vmem>>, %arg5: memref<128x128xf32, #tpu.memory_space<vmem>>, %arg6: memref<4x128xf32, #tpu.memory_space<vmem>>, %arg7: memref<256x128xf32, #tpu.memory_space<vmem>>, %arg8: memref<256x128xf32, #tpu.memory_space<vmem>>, %arg9: memref<256x128xf32, #tpu.memory_space<vmem>>) attributes {dimension_semantics = [#tpu.dimension_semantics<parallel>, #tpu.dimension_semantics<arbitrary>], iteration_bounds = array<i64: 1, 1>, scalar_prefetch = 0 : i64, scratch_operands = 1 : i64, tpu.core_type = #tpu.core_type<tc>, window_params = [{transform_indices = @transform_0, window_bounds = array<i64: 256, 256>}, {pipeline_mode = #tpu.pipeline_mode<synchronous>, transform_indices = @transform_1, window_bounds = array<i64: 256, 128>}, {transform_indices = @transform_2, window_bounds = array<i64: 256, 1>}, {pipeline_mode = #tpu.pipeline_mode<synchronous>, transform_indices = @transform_3, window_bounds = array<i64: 128, 128>}, {pipeline_mode = #tpu.pipeline_mode<synchronous>, transform_indices = @transform_4, window_bounds = array<i64: 4, 128>}, {transform_indices = @transform_5, window_bounds = array<i64: 256, 128>}, {transform_indices = @transform_6, window_bounds = array<i64: 256, 128>}]} {
    %c0_i32 = arith.constant 0 : i32
    %0 = arith.cmpi eq, %arg1, %c0_i32 : i32
    %1 = arith.extui %0 : i1 to i32
    %c0_i32_0 = arith.constant 0 : i32
    %2 = arith.cmpi ne, %1, %c0_i32_0 : i32
    scf.if %2 {
      %cst_9 = arith.constant 0.000000e+00 : f32
      %15 = vector.broadcast %cst_9 : f32 to vector<256x128xf32>
      %c0_10 = arith.constant 0 : index
      %c0_11 = arith.constant 0 : index
      %16 = vector.load %arg9[%c0_10, %c0_11] : memref<256x128xf32, #tpu.memory_space<vmem>>, vector<256x128xf32>
      tpu.vector_store %arg9[%c0_10, %c0_11], %15 {strides = array<i32>} : memref<256x128xf32, #tpu.memory_space<vmem>>, vector<256x128xf32>,
    } else {
    }
    %c256_i32 = arith.constant 256 : i32
    %3 = arith.muli %arg1, %c256_i32 : i32
    %4 = tpu.assume_multiple %3, 256 : i32
    %5 = arith.index_cast %4 : i32 to index
    %c0 = arith.constant 0 : index
    %6 = vector.load %arg3[%5, %c0] : memref<256x128xbf16, #tpu.memory_space<vmem>>, vector<256x128xbf16>
    %c0_1 = arith.constant 0 : index
    %c0_2 = arith.constant 0 : index
    %7 = vector.load %arg9[%c0_1, %c0_2] : memref<256x128xf32, #tpu.memory_space<vmem>>, vector<256x128xf32>
    %c0_3 = arith.constant 0 : index
    %c0_4 = arith.constant 0 : index
    %8 = vector.load %arg2[%c0_3, %c0_4] : memref<256x256xbf16, #tpu.memory_space<vmem>>, vector<256x256xbf16>
    %cst = arith.constant dense<0.000000e+00> : vector<256x128xf32>
    %9 = tpu.matmul %8, %6, %cst {dimension_numbers = #tpu.dot_dimension_numbers<[1], [0], [0], [1], [0, 0, 1, 1], [], []>} : vector<256x256xbf16>, vector<256x128xbf16>, vector<256x128xf32> -> vector<256x128xf32>
    %10 = arith.addf %7, %9 : vector<256x128xf32>
    %c0_5 = arith.constant 0 : index
    %c0_6 = arith.constant 0 : index
    %11 = vector.load %arg9[%c0_5, %c0_6] : memref<256x128xf32, #tpu.memory_space<vmem>>, vector<256x128xf32>
    tpu.vector_store %arg9[%c0_5, %c0_6], %10 {strides = array<i32>} : memref<256x128xf32, #tpu.memory_space<vmem>>, vector<256x128xf32>,
    %c0_i32_7 = arith.constant 0 : i32
    %12 = arith.cmpi eq, %arg1, %c0_i32_7 : i32
    %13 = arith.extui %12 : i1 to i32
    %c0_i32_8 = arith.constant 0 : i32
    %14 = arith.cmpi ne, %13, %c0_i32_8 : i32
    scf.if %14 {
      %c0_9 = arith.constant 0 : index
      %c0_10 = arith.constant 0 : index
      %15 = vector.load %arg6[%c0_9, %c0_10] : memref<4x128xf32, #tpu.memory_space<vmem>>, vector<1x128xf32>
      %c1 = arith.constant 1 : index
      %c0_11 = arith.constant 0 : index
      %16 = vector.load %arg6[%c1, %c0_11] : memref<4x128xf32, #tpu.memory_space<vmem>>, vector<1x128xf32>
      %c2 = arith.constant 2 : index
      %c0_12 = arith.constant 0 : index
      %17 = vector.load %arg6[%c2, %c0_12] : memref<4x128xf32, #tpu.memory_space<vmem>>, vector<1x128xf32>
      %c3 = arith.constant 3 : index
      %c0_13 = arith.constant 0 : index
      %18 = vector.load %arg6[%c3, %c0_13] : memref<4x128xf32, #tpu.memory_space<vmem>>, vector<1x128xf32>
      %c0_14 = arith.constant 0 : index
      %c0_15 = arith.constant 0 : index
      %19 = vector.load %arg9[%c0_14, %c0_15] : memref<256x128xf32, #tpu.memory_space<vmem>>, vector<256x128xf32>
      %c0_16 = arith.constant 0 : index
      %c0_17 = arith.constant 0 : index
      %20 = vector.load %arg5[%c0_16, %c0_17] : memref<128x128xf32, #tpu.memory_space<vmem>>, vector<128x128xf32>
      %cst_18 = arith.constant dense<0.000000e+00> : vector<256x128xf32>
      %21 = tpu.matmul %19, %20, %cst_18 {dimension_numbers = #tpu.dot_dimension_numbers<[1], [0], [0], [1], [0, 0, 1, 1], [], []>} : vector<256x128xf32>, vector<128x128xf32>, vector<256x128xf32> -> vector<256x128xf32>
      %c0_19 = arith.constant 0 : index
      %c0_20 = arith.constant 0 : index
      %22 = vector.load %arg4[%c0_19, %c0_20] : memref<256x1xf32, #tpu.memory_space<vmem>>, vector<256x1xf32>
      %23 = vector.broadcast %22 : vector<256x1xf32> to vector<256x128xf32>
      %24 = arith.mulf %21, %23 : vector<256x128xf32>
      %25 = vector.broadcast %15 : vector<1x128xf32> to vector<256x128xf32>
      %26 = arith.addf %24, %25 : vector<256x128xf32>
      %cst_21 = arith.constant dense<0.000000e+00> : vector<256xf32>
      %27 = vector.multi_reduction <add>, %26, %cst_21 [1] : vector<256x128xf32> to vector<256xf32>
      %28 = vector.shape_cast %27 : vector<256xf32> to vector<256x1xf32>
      %cst_22 = arith.constant 3.125000e-02 : f32
      %29 = vector.broadcast %cst_22 : f32 to vector<256x1xf32>
      %30 = arith.mulf %28, %29 : vector<256x1xf32>
      %31 = vector.broadcast %30 : vector<256x1xf32> to vector<256x128xf32>
      %32 = arith.subf %26, %31 : vector<256x128xf32>
      %33 = vector.broadcast %18 : vector<1x128xf32> to vector<256x128xf32>
      %34 = arith.mulf %32, %33 : vector<256x128xf32>
      %35 = arith.mulf %34, %34 : vector<256x128xf32>
      %cst_23 = arith.constant dense<0.000000e+00> : vector<256xf32>
      %36 = vector.multi_reduction <add>, %35, %cst_23 [1] : vector<256x128xf32> to vector<256xf32>
      %37 = vector.shape_cast %36 : vector<256xf32> to vector<256x1xf32>
      %cst_24 = arith.constant 3.125000e-02 : f32
      %38 = vector.broadcast %cst_24 : f32 to vector<256x1xf32>
      %39 = arith.mulf %37, %38 : vector<256x1xf32>
      %cst_25 = arith.constant 9.99999974E-6 : f32
      %40 = vector.broadcast %cst_25 : f32 to vector<256x1xf32>
      %41 = arith.addf %39, %40 : vector<256x1xf32>
      %42 = math.rsqrt %41 : vector<256x1xf32>
      %43 = vector.broadcast %42 : vector<256x1xf32> to vector<256x128xf32>
      %44 = arith.mulf %34, %43 : vector<256x128xf32>
      %45 = vector.broadcast %16 : vector<1x128xf32> to vector<256x128xf32>
      %46 = arith.mulf %44, %45 : vector<256x128xf32>
      %47 = vector.broadcast %17 : vector<1x128xf32> to vector<256x128xf32>
      %48 = arith.addf %46, %47 : vector<256x128xf32>
      %c0_26 = arith.constant 0 : index
      %c0_27 = arith.constant 0 : index
      %49 = vector.load %arg7[%c0_26, %c0_27] : memref<256x128xf32, #tpu.memory_space<vmem>>, vector<256x128xf32>
      %cst_28 = arith.constant 0.000000e+00 : f32
      %50 = vector.broadcast %cst_28 : f32 to vector<256x128xf32>
      %51 = arith.maximumf %48, %50 : vector<256x128xf32>
      %52 = arith.addf %49, %51 : vector<256x128xf32>
      %c0_29 = arith.constant 0 : index
      %c0_30 = arith.constant 0 : index
      %53 = vector.load %arg8[%c0_29, %c0_30] : memref<256x128xf32, #tpu.memory_space<vmem>>, vector<256x128xf32>
      tpu.vector_store %arg8[%c0_29, %c0_30], %52 {strides = array<i32>} : memref<256x128xf32, #tpu.memory_space<vmem>>, vector<256x128xf32>,
    } else {
    }
    return
  }
  func.func @transform_0(%arg0: i32, %arg1: i32) -> (i32, i32) {
    %c0_i32 = arith.constant 0 : i32
    return %arg0, %arg1 : i32, i32
  }
  func.func @transform_1(%arg0: i32, %arg1: i32) -> (i32, i32) {
    %c0_i32 = arith.constant 0 : i32
    %c0_i32_0 = arith.constant 0 : i32
    %c0_i32_1 = arith.constant 0 : i32
    return %c0_i32, %c0_i32_0 : i32, i32
  }
  func.func @transform_2(%arg0: i32, %arg1: i32) -> (i32, i32) {
    %c0_i32 = arith.constant 0 : i32
    %c0_i32_0 = arith.constant 0 : i32
    return %arg0, %c0_i32 : i32, i32
  }
  func.func @transform_3(%arg0: i32, %arg1: i32) -> (i32, i32) {
    %c0_i32 = arith.constant 0 : i32
    %c0_i32_0 = arith.constant 0 : i32
    %c0_i32_1 = arith.constant 0 : i32
    return %c0_i32, %c0_i32_0 : i32, i32
  }
  func.func @transform_4(%arg0: i32, %arg1: i32) -> (i32, i32) {
    %c0_i32 = arith.constant 0 : i32
    %c0_i32_0 = arith.constant 0 : i32
    %c0_i32_1 = arith.constant 0 : i32
    return %c0_i32, %c0_i32_0 : i32, i32
  }
  func.func @transform_5(%arg0: i32, %arg1: i32) -> (i32, i32) {
    %c0_i32 = arith.constant 0 : i32
    %c0_i32_0 = arith.constant 0 : i32
    return %arg0, %c0_i32 : i32, i32
  }
  func.func @transform_6(%arg0: i32, %arg1: i32) -> (i32, i32) {
    %c0_i32 = arith.constant 0 : i32
    %c0_i32_0 = arith.constant 0 : i32
    return %arg0, %c0_i32 : i32, i32
  }
}

</mosaic_0001>

<llo_original>
// kernel: tpu_custom_call.1
$region0: #{tpu_custom_call.1}
  #allocation0 [shape = 'u32[]', space=smem, size = 0x4, offset = 0x4, fixed_abs, tag = 'smem constant byte address 0x4 - core index']
  #allocation1 [shape = 'u32[72,128]{1,0:T(1,128)}', space=vmem, size = 0x9000, scoped, tag = 'internal scratch']
  #allocation2 [shape = 'f32[256,128]{1,0:T(8,128)}', space=vmem, size = 0x20000, scoped, tag = 'scratch operand']
  %s0 = inlined_call_operand.vmem [shape: bf16[256,256], index: 0, kind: input, shape index: {}]
  %s1 = inlined_call_operand.vmem [shape: bf16[256,128], index: 1, kind: input, shape index: {}]
  %s2 = inlined_call_operand.vmem [shape: f32[256,1], index: 2, kind: input, shape index: {}]
  %s3 = inlined_call_operand.vmem [shape: f32[128,128], index: 3, kind: input, shape index: {}]
  %s4 = inlined_call_operand.vmem [shape: f32[4,128], index: 4, kind: input, shape index: {}]
  %s5 = inlined_call_operand.hbm [shape: f32[256,128], index: 5, kind: input, shape index: {}, may-alias: {5,6}]
  %s6 = inlined_call_operand.hbm [shape: f32[256,128], index: 6, kind: output, shape index: {}, may-alias: {5,6}]
  %s7 = sld [smem:[#allocation0]]
  $region46: #{tpu_custom_call.1} parent=0
    _
  %s9 = ssub.s32 1, %s7
  %s10 = scalar_select 0, %s9, %s7
  $region1: #{tpu_custom_call.1} parent=0
    #allocation3 [shape = 'u8[131072]{0}', space=vmem, size = 0x20000, scoped, tag = 'input window, operand 5, single buffered']
    #allocation4 [shape = 's32[1]{0}', space=sflag, size = 0x4, scoped, tag = 'scoped memory for tpu_custom_call.1']
    #allocation5 [shape = 's32[1]{0}', space=sflag, size = 0x4, scoped, tag = 'scoped memory for tpu_custom_call.1']
    #allocation6 [shape = 'u8[131072]{0}', space=vmem, size = 0x20000, scoped, tag = 'output window, operand 0, single buffered']
    %11 = vsyncpa [#allocation4], 0
    %12 = vsyncpa [#allocation5], 0
    // Predicated region
    $region2: #{tpu_custom_call.1} parent=1 // pred_check
      _
    $region3: #{tpu_custom_call.1} parent=1 // pred_check_branch
      %14 = sbr.rel (0) target = $region5
    $region4: #{tpu_custom_call.1} parent=1 // pred_region
      _
    $region5: #{tpu_custom_call.1} parent=1 // pred_fallthru
      _
    // Predicated region
    $region6: #{tpu_custom_call.1} parent=1 // pred_check
      _
    $region7: #{tpu_custom_call.1} parent=1 // pred_check_branch
      %16 = sbr.rel (0) target = $region9
    $region8: #{tpu_custom_call.1} parent=1 // pred_region
      _
    $region9: #{tpu_custom_call.1} parent=1 // pred_fallthru
      _
    // Predicated region
    $region10: #{tpu_custom_call.1} parent=1 // pred_check
      _
    $region11: #{tpu_custom_call.1} parent=1 // pred_check_branch
      %18 = sbr.rel (0) target = $region13
    $region12: #{tpu_custom_call.1} parent=1 // pred_region
      _
    $region13: #{tpu_custom_call.1} parent=1 // pred_fallthru
      _
    // Predicated region
    $region14: #{tpu_custom_call.1} parent=1 // pred_check
      _
    $region15: #{tpu_custom_call.1} parent=1 // pred_check_branch
      %20 = sbr.rel (0) target = $region17
    $region16: #{tpu_custom_call.1} parent=1 // pred_region
      _
    $region17: #{tpu_custom_call.1} parent=1 // pred_fallthru
      _
    // Predicated region
    $region18: #{tpu_custom_call.1} parent=1 // pred_check
      _
    $region19: #{tpu_custom_call.1} parent=1 // pred_check_branch
      %22 = sbr.rel (0) target = $region21
    $region20: #{tpu_custom_call.1} parent=1 // pred_region
      _
    $region21: #{tpu_custom_call.1} parent=1 // pred_fallthru
      _
    // Predicated region
    $region22: #{tpu_custom_call.1} parent=1 // pred_check
      _
    $region23: #{tpu_custom_call.1} parent=1 // pred_check_branch
      %24 = sbr.rel (0) target = $region25
    $region24: #{tpu_custom_call.1} parent=1 // pred_region
      %26 = vsyncadd [#allocation4], 0
      %s27 = sshll.u32 %s5, 4
      %s28 = int_to_ptr.hbm [resolvable:$true] %s27
      %s29 = sshll.u32 [#allocation3], 4
      %s30 = int_to_ptr.vmem [resolvable:$true] %s29
      %35 = dma.hbm_to_vmem [thread:$0]  %s28, 4096, %s30, [#allocation4], 128, 128, 8
    $region25: #{tpu_custom_call.1} parent=1 // pred_fallthru
      _
    // Predicated region
    $region26: #{tpu_custom_call.1} parent=1 // pred_check
      _
    $region27: #{tpu_custom_call.1} parent=1 // pred_check_branch
      %37 = sbr.rel (0) target = $region29
    $region28: #{tpu_custom_call.1} parent=1 // pred_region
      %39 = dma.done [#allocation4], 4096
    $region29: #{tpu_custom_call.1} parent=1 // pred_fallthru
      _
    %p40 = scmp.eq.s32.totalorder 0, 0
    // Predicated region
    $region30: #{tpu_custom_call.1} parent=1 // pred_check
      %p41 = pneg %p40
    $region31: #{tpu_custom_call.1} parent=1 // pred_check_branch
      %43 = sbr.rel (%p41) target = $region33
    $region32: #{tpu_custom_call.1} parent=1 // pred_region
      %44 = vst [vmem:[#allocation2] sm:$0xff] 0.0
      %45 = vst [vmem:[#allocation2 + $0x8] sm:$0xff] 0.0
      %46 = vst [vmem:[#allocation2 + $0x10] sm:$0xff] 0.0
      %47 = vst [vmem:[#allocation2 + $0x18] sm:$0xff] 0.0
      %48 = vst [vmem:[#allocation2 + $0x20] sm:$0xff] 0.0
      %49 = vst [vmem:[#allocation2 + $0x28] sm:$0xff] 0.0
      %50 = vst [vmem:[#allocation2 + $0x30] sm:$0xff] 0.0
      %51 = vst [vmem:[#allocation2 + $0x38] sm:$0xff] 0.0
      %52 = vst [vmem:[#allocation2 + $0x40] sm:$0xff] 0.0
      %53 = vst [vmem:[#allocation2 + $0x48] sm:$0xff] 0.0
      %54 = vst [vmem:[#allocation2 + $0x50] sm:$0xff] 0.0
      %55 = vst [vmem:[#allocation2 + $0x58] sm:$0xff] 0.0
      %56 = vst [vmem:[#allocation2 + $0x60] sm:$0xff] 0.0
      %57 = vst [vmem:[#allocation2 + $0x68] sm:$0xff] 0.0
      %58 = vst [vmem:[#allocation2 + $0x70] sm:$0xff] 0.0
      %59 = vst [vmem:[#allocation2 + $0x78] sm:$0xff] 0.0
      %60 = vst [vmem:[#allocation2 + $0x80] sm:$0xff] 0.0
      %61 = vst [vmem:[#allocation2 + $0x88] sm:$0xff] 0.0
      %62 = vst [vmem:[#allocation2 + $0x90] sm:$0xff] 0.0
      %63 = vst [vmem:[#allocation2 + $0x98] sm:$0xff] 0.0
      %64 = vst [vmem:[#allocation2 + $0xa0] sm:$0xff] 0.0
      %65 = vst [vmem:[#allocation2 + $0xa8] sm:$0xff] 0.0
      %66 = vst [vmem:[#allocation2 + $0xb0] sm:$0xff] 0.0
      %67 = vst [vmem:[#allocation2 + $0xb8] sm:$0xff] 0.0
      %68 = vst [vmem:[#allocation2 + $0xc0] sm:$0xff] 0.0
      %69 = vst [vmem:[#allocation2 + $0xc8] sm:$0xff] 0.0
      %70 = vst [vmem:[#allocation2 + $0xd0] sm:$0xff] 0.0
      %71 = vst [vmem:[#allocation2 + $0xd8] sm:$0xff] 0.0
      %72 = vst [vmem:[#allocation2 + $0xe0] sm:$0xff] 0.0
      %73 = vst [vmem:[#allocation2 + $0xe8] sm:$0xff] 0.0
      %74 = vst [vmem:[#allocation2 + $0xf0] sm:$0xff] 0.0
      %75 = vst [vmem:[#allocation2 + $0xf8] sm:$0xff] 0.0
    $region33: #{tpu_custom_call.1} parent=1 // pred_fallthru
      _
    %s76 = smul.u32 0, 256
    %s77 = sshra.s32 %s76, 3
    %s78 = sand.u32 %s76, 7
    %s79 = smul.addr %s77, 4
    %s80 = scalar_lea.vmem %s1, %s79
    %v81 = vld [vmem:[%s80] sm:$0xf]
    %v82 = vld [vmem:[%s80 + $0x4] sm:$0xf]
    %v83 = vld [vmem:[%s80 + $0x8] sm:$0xf]
    %v84 = vld [vmem:[%s80 + $0xc] sm:$0xf]
    %v85 = vld [vmem:[%s80 + $0x10] sm:$0xf]
    %v86 = vld [vmem:[%s80 + $0x14] sm:$0xf]
    %v87 = vld [vmem:[%s80 + $0x18] sm:$0xf]
    %v88 = vld [vmem:[%s80 + $0x1c] sm:$0xf]
    %v89 = vld [vmem:[%s80 + $0x20] sm:$0xf]
    %v90 = vld [vmem:[%s80 + $0x24] sm:$0xf]
    %v91 = vld [vmem:[%s80 + $0x28] sm:$0xf]
    %v92 = vld [vmem:[%s80 + $0x2c] sm:$0xf]
    %v93 = vld [vmem:[%s80 + $0x30] sm:$0xf]
    %v94 = vld [vmem:[%s80 + $0x34] sm:$0xf]
    %v95 = vld [vmem:[%s80 + $0x38] sm:$0xf]
    %v96 = vld [vmem:[%s80 + $0x3c] sm:$0xf]
    %v97 = vld [vmem:[%s80 + $0x40] sm:$0xf]
    %v98 = vld [vmem:[%s80 + $0x44] sm:$0xf]
    %v99 = vld [vmem:[%s80 + $0x48] sm:$0xf]
    %v100 = vld [vmem:[%s80 + $0x4c] sm:$0xf]
    %v101 = vld [vmem:[%s80 + $0x50] sm:$0xf]
    %v102 = vld [vmem:[%s80 + $0x54] sm:$0xf]
    %v103 = vld [vmem:[%s80 + $0x58] sm:$0xf]
    %v104 = vld [vmem:[%s80 + $0x5c] sm:$0xf]
    %v105 = vld [vmem:[%s80 + $0x60] sm:$0xf]
    %v106 = vld [vmem:[%s80 + $0x64] sm:$0xf]
    %v107 = vld [vmem:[%s80 + $0x68] sm:$0xf]
    %v108 = vld [vmem:[%s80 + $0x6c] sm:$0xf]
    %v109 = vld [vmem:[%s80 + $0x70] sm:$0xf]
    %v110 = vld [vmem:[%s80 + $0x74] sm:$0xf]
    %v111 = vld [vmem:[%s80 + $0x78] sm:$0xf]
    %v112 = vld [vmem:[%s80 + $0x7c] sm:$0xf]
    %v113 = vld [vmem:[#allocation2] sm:$0xff]
    %v114 = vld [vmem:[#allocation2 + $0x8] sm:$0xff]
    %v115 = vld [vmem:[#allocation2 + $0x10] sm:$0xff]
    %v116 = vld [vmem:[#allocation2 + $0x18] sm:$0xff]
    %v117 = vld [vmem:[#allocation2 + $0x20] sm:$0xff]
    %v118 = vld [vmem:[#allocation2 + $0x28] sm:$0xff]
    %v119 = vld [vmem:[#allocation2 + $0x30] sm:$0xff]
    %v120 = vld [vmem:[#allocation2 + $0x38] sm:$0xff]
    %v121 = vld [vmem:[#allocation2 + $0x40] sm:$0xff]
    %v122 = vld [vmem:[#allocation2 + $0x48] sm:$0xff]
    %v123 = vld [vmem:[#allocation2 + $0x50] sm:$0xff]
    %v124 = vld [vmem:[#allocation2 + $0x58] sm:$0xff]
    %v125 = vld [vmem:[#allocation2 + $0x60] sm:$0xff]
    %v126 = vld [vmem:[#allocation2 + $0x68] sm:$0xff]
    %v127 = vld [vmem:[#allocation2 + $0x70] sm:$0xff]
    %v128 = vld [vmem:[#allocation2 + $0x78] sm:$0xff]
    %v129 = vld [vmem:[#allocation2 + $0x80] sm:$0xff]
    %v130 = vld [vmem:[#allocation2 + $0x88] sm:$0xff]
    %v131 = vld [vmem:[#allocation2 + $0x90] sm:$0xff]
    %v132 = vld [vmem:[#allocation2 + $0x98] sm:$0xff]
    %v133 = vld [vmem:[#allocation2 + $0xa0] sm:$0xff]
    %v134 = vld [vmem:[#allocation2 + $0xa8] sm:$0xff]
    %v135 = vld [vmem:[#allocation2 + $0xb0] sm:$0xff]
    %v136 = vld [vmem:[#allocation2 + $0xb8] sm:$0xff]
    %v137 = vld [vmem:[#allocation2 + $0xc0] sm:$0xff]
    %v138 = vld [vmem:[#allocation2 + $0xc8] sm:$0xff]
    %v139 = vld [vmem:[#allocation2 + $0xd0] sm:$0xff]
    %v140 = vld [vmem:[#allocation2 + $0xd8] sm:$0xff]
    %v141 = vld [vmem:[#allocation2 + $0xe0] sm:$0xff]
    %v142 = vld [vmem:[#allocation2 + $0xe8] sm:$0xff]
    %v143 = vld [vmem:[#allocation2 + $0xf0] sm:$0xff]
    %v144 = vld [vmem:[#allocation2 + $0xf8] sm:$0xff]
    %v145 = vld [vmem:[%s0] sm:$0xff]
    %v146 = vld [vmem:[%s0 + $0x8] sm:$0xff]
    %v147 = vld [vmem:[%s0 + $0x10] sm:$0xff]
    %v148 = vld [vmem:[%s0 + $0x18] sm:$0xff]
    %v149 = vld [vmem:[%s0 + $0x20] sm:$0xff]
    %v150 = vld [vmem:[%s0 + $0x28] sm:$0xff]
    %v151 = vld [vmem:[%s0 + $0x30] sm:$0xff]
    %v152 = vld [vmem:[%s0 + $0x38] sm:$0xff]
    %v153 = vld [vmem:[%s0 + $0x40] sm:$0xff]
    %v154 = vld [vmem:[%s0 + $0x48] sm:$0xff]
    %v155 = vld [vmem:[%s0 + $0x50] sm:$0xff]
    %v156 = vld [vmem:[%s0 + $0x58] sm:$0xff]
    %v157 = vld [vmem:[%s0 + $0x60] sm:$0xff]
    %v158 = vld [vmem:[%s0 + $0x68] sm:$0xff]
    %v159 = vld [vmem:[%s0 + $0x70] sm:$0xff]
    %v160 = vld [vmem:[%s0 + $0x78] sm:$0xff]
    %v161 = vld [vmem:[%s0 + $0x80] sm:$0xff]
    %v162 = vld [vmem:[%s0 + $0x88] sm:$0xff]
    %v163 = vld [vmem:[%s0 + $0x90] sm:$0xff]
    %v164 = vld [vmem:[%s0 + $0x98] sm:$0xff]
    %v165 = vld [vmem:[%s0 + $0xa0] sm:$0xff]
    %v166 = vld [vmem:[%s0 + $0xa8] sm:$0xff]
    %v167 = vld [vmem:[%s0 + $0xb0] sm:$0xff]
    %v168 = vld [vmem:[%s0 + $0xb8] sm:$0xff]
    %v169 = vld [vmem:[%s0 + $0xc0] sm:$0xff]
    %v170 = vld [vmem:[%s0 + $0xc8] sm:$0xff]
    %v171 = vld [vmem:[%s0 + $0xd0] sm:$0xff]
    %v172 = vld [vmem:[%s0 + $0xd8] sm:$0xff]
    %v173 = vld [vmem:[%s0 + $0xe0] sm:$0xff]
    %v174 = vld [vmem:[%s0 + $0xe8] sm:$0xff]
    %v175 = vld [vmem:[%s0 + $0xf0] sm:$0xff]
    %v176 = vld [vmem:[%s0 + $0xf8] sm:$0xff]
    %v209 = vunpack.c.l.b16 %v145
    %v210 = vunpack.c.h.b16 %v145
    %v211 = vunpack.c.l.b16 %v146
    %v212 = vunpack.c.h.b16 %v146
    %v213 = vunpack.c.l.b16 %v147
    %v214 = vunpack.c.h.b16 %v147
    %v215 = vunpack.c.l.b16 %v148
    %v216 = vunpack.c.h.b16 %v148
    %v217 = vunpack.c.l.b16 %v149
    %v218 = vunpack.c.h.b16 %v149
    %v219 = vunpack.c.l.b16 %v150
    %v220 = vunpack.c.h.b16 %v150
    %v221 = vunpack.c.l.b16 %v151
    %v222 = vunpack.c.h.b16 %v151
    %v223 = vunpack.c.l.b16 %v152
    %v224 = vunpack.c.h.b16 %v152
    %v225 = vunpack.c.l.b16 %v153
    %v226 = vunpack.c.h.b16 %v153
    %v227 = vunpack.c.l.b16 %v154
    %v228 = vunpack.c.h.b16 %v154
    %v229 = vunpack.c.l.b16 %v155
    %v230 = vunpack.c.h.b16 %v155
    %v231 = vunpack.c.l.b16 %v156
    %v232 = vunpack.c.h.b16 %v156
    %v233 = vunpack.c.l.b16 %v157
    %v234 = vunpack.c.h.b16 %v157
    %v235 = vunpack.c.l.b16 %v158
    %v236 = vunpack.c.h.b16 %v158
    %v237 = vunpack.c.l.b16 %v159
    %v238 = vunpack.c.h.b16 %v159
    %v239 = vunpack.c.l.b16 %v160
    %v240 = vunpack.c.h.b16 %v160
    %v241 = vunpack.c.l.b16 %v161
    %v242 = vunpack.c.h.b16 %v161
    %v243 = vunpack.c.l.b16 %v162
    %v244 = vunpack.c.h.b16 %v162
    %v245 = vunpack.c.l.b16 %v163
    %v246 = vunpack.c.h.b16 %v163
    %v247 = vunpack.c.l.b16 %v164
    %v248 = vunpack.c.h.b16 %v164
    %v249 = vunpack.c.l.b16 %v165
    %v250 = vunpack.c.h.b16 %v165
    %v251 = vunpack.c.l.b16 %v166
    %v252 = vunpack.c.h.b16 %v166
    %v253 = vunpack.c.l.b16 %v167
    %v254 = vunpack.c.h.b16 %v167
    %v255 = vunpack.c.l.b16 %v168
    %v256 = vunpack.c.h.b16 %v168
    %v257 = vunpack.c.l.b16 %v169
    %v258 = vunpack.c.h.b16 %v169
    %v259 = vunpack.c.l.b16 %v170
    %v260 = vunpack.c.h.b16 %v170
    %v261 = vunpack.c.l.b16 %v171
    %v262 = vunpack.c.h.b16 %v171
    %v263 = vunpack.c.l.b16 %v172
    %v264 = vunpack.c.h.b16 %v172
    %v265 = vunpack.c.l.b16 %v173
    %v266 = vunpack.c.h.b16 %v173
    %v267 = vunpack.c.l.b16 %v174
    %v268 = vunpack.c.h.b16 %v174
    %v269 = vunpack.c.l.b16 %v175
    %v270 = vunpack.c.h.b16 %v175
    %v271 = vunpack.c.l.b16 %v176
    %v272 = vunpack.c.h.b16 %v176
    %v273 = vpack.c.b16 %v211, %v209
    %v274 = vpack.c.b16 %v212, %v210
    %v275 = vpack.c.b16 %v215, %v213
    %v276 = vpack.c.b16 %v216, %v214
    %v277 = vpack.c.b16 %v219, %v217
    %v278 = vpack.c.b16 %v220, %v218
    %v279 = vpack.c.b16 %v223, %v221
    %v280 = vpack.c.b16 %v224, %v222
    %v281 = vpack.c.b16 %v227, %v225
    %v282 = vpack.c.b16 %v228, %v226
    %v283 = vpack.c.b16 %v231, %v229
    %v284 = vpack.c.b16 %v232, %v230
    %v285 = vpack.c.b16 %v235, %v233
    %v286 = vpack.c.b16 %v236, %v234
    %v287 = vpack.c.b16 %v239, %v237
    %v288 = vpack.c.b16 %v240, %v238
    %v289 = vpack.c.b16 %v243, %v241
    %v290 = vpack.c.b16 %v244, %v242
    %v291 = vpack.c.b16 %v247, %v245
    %v292 = vpack.c.b16 %v248, %v246
    %v293 = vpack.c.b16 %v251, %v249
    %v294 = vpack.c.b16 %v252, %v250
    %v295 = vpack.c.b16 %v255, %v253
    %v296 = vpack.c.b16 %v256, %v254
    %v297 = vpack.c.b16 %v259, %v257
    %v298 = vpack.c.b16 %v260, %v258
    %v299 = vpack.c.b16 %v263, %v261
    %v300 = vpack.c.b16 %v264, %v262
    %v301 = vpack.c.b16 %v267, %v265
    %v302 = vpack.c.b16 %v268, %v266
    %v303 = vpack.c.b16 %v271, %v269
    %v304 = vpack.c.b16 %v272, %v270
    %v369 = vunpack.c.l.b16 %v81
    %v370 = vunpack.c.l.b16 %v82
    %v371 = vunpack.c.l.b16 %v83
    %v372 = vunpack.c.l.b16 %v84
    %v373 = vunpack.c.l.b16 %v85
    %v374 = vunpack.c.l.b16 %v86
    %v375 = vunpack.c.l.b16 %v87
    %v376 = vunpack.c.l.b16 %v88
    %v377 = vunpack.c.l.b16 %v89
    %v378 = vunpack.c.l.b16 %v90
    %v379 = vunpack.c.l.b16 %v91
    %v380 = vunpack.c.l.b16 %v92
    %v381 = vunpack.c.l.b16 %v93
    %v382 = vunpack.c.l.b16 %v94
    %v383 = vunpack.c.l.b16 %v95
    %v384 = vunpack.c.l.b16 %v96
    %v385 = vunpack.c.l.b16 %v97
    %v386 = vunpack.c.l.b16 %v98
    %v387 = vunpack.c.l.b16 %v99
    %v388 = vunpack.c.l.b16 %v100
    %v389 = vunpack.c.l.b16 %v101
    %v390 = vunpack.c.l.b16 %v102
    %v391 = vunpack.c.l.b16 %v103
    %v392 = vunpack.c.l.b16 %v104
    %v393 = vunpack.c.l.b16 %v105
    %v394 = vunpack.c.l.b16 %v106
    %v395 = vunpack.c.l.b16 %v107
    %v396 = vunpack.c.l.b16 %v108
    %v397 = vunpack.c.l.b16 %v109
    %v398 = vunpack.c.l.b16 %v110
    %v399 = vunpack.c.l.b16 %v111
    %v400 = vunpack.c.l.b16 %v112
    %v401 = vpack.c.b16 %v370, %v369
    %v402 = vpack.c.b16 %v372, %v371
    %v403 = vpack.c.b16 %v374, %v373
    %v404 = vpack.c.b16 %v376, %v375
    %v405 = vpack.c.b16 %v378, %v377
    %v406 = vpack.c.b16 %v380, %v379
    %v407 = vpack.c.b16 %v382, %v381
    %v408 = vpack.c.b16 %v384, %v383
    %v409 = vpack.c.b16 %v386, %v385
    %v410 = vpack.c.b16 %v388, %v387
    %v411 = vpack.c.b16 %v390, %v389
    %v412 = vpack.c.b16 %v392, %v391
    %v413 = vpack.c.b16 %v394, %v393
    %v414 = vpack.c.b16 %v396, %v395
    %v415 = vpack.c.b16 %v398, %v397
    %v416 = vpack.c.b16 %v400, %v399
    %433 = vmatpush.bf16.msra.mxu0 %v408
    %434 = vmatpush.bf16.msra.mxu0 %v407
    %435 = vmatpush.bf16.msra.mxu0 %v406
    %436 = vmatpush.bf16.msra.mxu0 %v405
    %437 = vmatpush.bf16.msra.mxu0 %v404
    %438 = vmatpush.bf16.msra.mxu0 %v403
    %439 = vmatpush.bf16.msra.mxu0 %v402
    %440 = vmatpush.bf16.msra.mxu0 %v401
    %441 = vmatmul.bf16.gmra.mxu0 %v273
    %v442 = vpop.f32.mrf.mxu0
    %v443 = vadd.f32 0.0, %v442
    %v444 = vpop.f32.mrf.mxu0
    %v445 = vadd.f32 0.0, %v444
    %446 = vmatmul.bf16.gmra.mxu0 %v275
    %v447 = vpop.f32.mrf.mxu0
    %v448 = vadd.f32 0.0, %v447
    %v449 = vpop.f32.mrf.mxu0
    %v450 = vadd.f32 0.0, %v449
    %451 = vmatmul.bf16.gmra.mxu0 %v277
    %v452 = vpop.f32.mrf.mxu0
    %v453 = vadd.f32 0.0, %v452
    %v454 = vpop.f32.mrf.mxu0
    %v455 = vadd.f32 0.0, %v454
    %456 = vmatmul.bf16.gmra.mxu0 %v279
    %v457 = vpop.f32.mrf.mxu0
    %v458 = vadd.f32 0.0, %v457
    %v459 = vpop.f32.mrf.mxu0
    %v460 = vadd.f32 0.0, %v459
    %461 = vmatmul.bf16.gmra.mxu0 %v281
    %v462 = vpop.f32.mrf.mxu0
    %v463 = vadd.f32 0.0, %v462
    %v464 = vpop.f32.mrf.mxu0
    %v465 = vadd.f32 0.0, %v464
    %466 = vmatmul.bf16.gmra.mxu0 %v283
    %v467 = vpop.f32.mrf.mxu0
    %v468 = vadd.f32 0.0, %v467
    %v469 = vpop.f32.mrf.mxu0
    %v470 = vadd.f32 0.0, %v469
    %471 = vmatmul.bf16.gmra.mxu0 %v285
    %v472 = vpop.f32.mrf.mxu0
    %v473 = vadd.f32 0.0, %v472
    %v474 = vpop.f32.mrf.mxu0
    %v475 = vadd.f32 0.0, %v474
    %476 = vmatmul.bf16.gmra.mxu0 %v287
    %v477 = vpop.f32.mrf.mxu0
    %v478 = vadd.f32 0.0, %v477
    %v479 = vpop.f32.mrf.mxu0
    %v480 = vadd.f32 0.0, %v479
    %481 = vmatmul.bf16.gmra.mxu0 %v289
    %v482 = vpop.f32.mrf.mxu0
    %v483 = vadd.f32 0.0, %v482
    %v484 = vpop.f32.mrf.mxu0
    %v485 = vadd.f32 0.0, %v484
    %486 = vmatmul.bf16.gmra.mxu0 %v291
    %v487 = vpop.f32.mrf.mxu0
    %v488 = vadd.f32 0.0, %v487
    %v489 = vpop.f32.mrf.mxu0
    %v490 = vadd.f32 0.0, %v489
    %491 = vmatmul.bf16.gmra.mxu0 %v293
    %v492 = vpop.f32.mrf.mxu0
    %v493 = vadd.f32 0.0, %v492
    %v494 = vpop.f32.mrf.mxu0
    %v495 = vadd.f32 0.0, %v494
    %496 = vmatmul.bf16.gmra.mxu0 %v295
    %v497 = vpop.f32.mrf.mxu0
    %v498 = vadd.f32 0.0, %v497
    %v499 = vpop.f32.mrf.mxu0
    %v500 = vadd.f32 0.0, %v499
    %501 = vmatmul.bf16.gmra.mxu0 %v297
    %v502 = vpop.f32.mrf.mxu0
    %v503 = vadd.f32 0.0, %v502
    %v504 = vpop.f32.mrf.mxu0
    %v505 = vadd.f32 0.0, %v504
    %506 = vmatmul.bf16.gmra.mxu0 %v299
    %v507 = vpop.f32.mrf.mxu0
    %v508 = vadd.f32 0.0, %v507
    %v509 = vpop.f32.mrf.mxu0
    %v510 = vadd.f32 0.0, %v509
    %511 = vmatmul.bf16.gmra.mxu0 %v301
    %v512 = vpop.f32.mrf.mxu0
    %v513 = vadd.f32 0.0, %v512
    %v514 = vpop.f32.mrf.mxu0
    %v515 = vadd.f32 0.0, %v514
    %516 = vmatmul.bf16.gmra.mxu0 %v303
    %v517 = vpop.f32.mrf.mxu0
    %v518 = vadd.f32 0.0, %v517
    %v519 = vpop.f32.mrf.mxu0
    %v520 = vadd.f32 0.0, %v519
    %521 = vdwg.mxu0
    %522 = vmatpush.bf16.msra.mxu0 %v416
    %523 = vmatpush.bf16.msra.mxu0 %v415
    %524 = vmatpush.bf16.msra.mxu0 %v414
    %525 = vmatpush.bf16.msra.mxu0 %v413
    %526 = vmatpush.bf16.msra.mxu0 %v412
    %527 = vmatpush.bf16.msra.mxu0 %v411
    %528 = vmatpush.bf16.msra.mxu0 %v410
    %529 = vmatpush.bf16.msra.mxu0 %v409
    %530 = vmatmul.bf16.gmra.mxu0 %v274
    %v531 = vpop.f32.mrf.mxu0
    %v532 = vadd.f32 %v443, %v531
    %v533 = vpop.f32.mrf.mxu0
    %v534 = vadd.f32 %v445, %v533
    %535 = vmatmul.bf16.gmra.mxu0 %v276
    %v536 = vpop.f32.mrf.mxu0
    %v537 = vadd.f32 %v448, %v536
    %v538 = vpop.f32.mrf.mxu0
    %v539 = vadd.f32 %v450, %v538
    %540 = vmatmul.bf16.gmra.mxu0 %v278
    %v541 = vpop.f32.mrf.mxu0
    %v542 = vadd.f32 %v453, %v541
    %v543 = vpop.f32.mrf.mxu0
    %v544 = vadd.f32 %v455, %v543
    %545 = vmatmul.bf16.gmra.mxu0 %v280
    %v546 = vpop.f32.mrf.mxu0
    %v547 = vadd.f32 %v458, %v546
    %v548 = vpop.f32.mrf.mxu0
    %v549 = vadd.f32 %v460, %v548
    %550 = vmatmul.bf16.gmra.mxu0 %v282
    %v551 = vpop.f32.mrf.mxu0
    %v552 = vadd.f32 %v463, %v551
    %v553 = vpop.f32.mrf.mxu0
    %v554 = vadd.f32 %v465, %v553
    %555 = vmatmul.bf16.gmra.mxu0 %v284
    %v556 = vpop.f32.mrf.mxu0
    %v557 = vadd.f32 %v468, %v556
    %v558 = vpop.f32.mrf.mxu0
    %v559 = vadd.f32 %v470, %v558
    %560 = vmatmul.bf16.gmra.mxu0 %v286
    %v561 = vpop.f32.mrf.mxu0
    %v562 = vadd.f32 %v473, %v561
    %v563 = vpop.f32.mrf.mxu0
    %v564 = vadd.f32 %v475, %v563
    %565 = vmatmul.bf16.gmra.mxu0 %v288
    %v566 = vpop.f32.mrf.mxu0
    %v567 = vadd.f32 %v478, %v566
    %v568 = vpop.f32.mrf.mxu0
    %v569 = vadd.f32 %v480, %v568
    %570 = vmatmul.bf16.gmra.mxu0 %v290
    %v571 = vpop.f32.mrf.mxu0
    %v572 = vadd.f32 %v483, %v571
    %v573 = vpop.f32.mrf.mxu0
    %v574 = vadd.f32 %v485, %v573
    %575 = vmatmul.bf16.gmra.mxu0 %v292
    %v576 = vpop.f32.mrf.mxu0
    %v577 = vadd.f32 %v488, %v576
    %v578 = vpop.f32.mrf.mxu0
    %v579 = vadd.f32 %v490, %v578
    %580 = vmatmul.bf16.gmra.mxu0 %v294
    %v581 = vpop.f32.mrf.mxu0
    %v582 = vadd.f32 %v493, %v581
    %v583 = vpop.f32.mrf.mxu0
    %v584 = vadd.f32 %v495, %v583
    %585 = vmatmul.bf16.gmra.mxu0 %v296
    %v586 = vpop.f32.mrf.mxu0
    %v587 = vadd.f32 %v498, %v586
    %v588 = vpop.f32.mrf.mxu0
    %v589 = vadd.f32 %v500, %v588
    %590 = vmatmul.bf16.gmra.mxu0 %v298
    %v591 = vpop.f32.mrf.mxu0
    %v592 = vadd.f32 %v503, %v591
    %v593 = vpop.f32.mrf.mxu0
    %v594 = vadd.f32 %v505, %v593
    %595 = vmatmul.bf16.gmra.mxu0 %v300
    %v596 = vpop.f32.mrf.mxu0
    %v597 = vadd.f32 %v508, %v596
    %v598 = vpop.f32.mrf.mxu0
    %v599 = vadd.f32 %v510, %v598
    %600 = vmatmul.bf16.gmra.mxu0 %v302
    %v601 = vpop.f32.mrf.mxu0
    %v602 = vadd.f32 %v513, %v601
    %v603 = vpop.f32.mrf.mxu0
    %v604 = vadd.f32 %v515, %v603
    %605 = vmatmul.bf16.gmra.mxu0 %v304
    %v606 = vpop.f32.mrf.mxu0
    %v607 = vadd.f32 %v518, %v606
    %v608 = vpop.f32.mrf.mxu0
    %v609 = vadd.f32 %v520, %v608
    %610 = vdwg.mxu0
    %v611 = vadd.f32 %v113, %v532
    %v612 = vadd.f32 %v114, %v534
    %v613 = vadd.f32 %v115, %v537
    %v614 = vadd.f32 %v116, %v539
    %v615 = vadd.f32 %v117, %v542
    %v616 = vadd.f32 %v118, %v544
    %v617 = vadd.f32 %v119, %v547
    %v618 = vadd.f32 %v120, %v549
    %v619 = vadd.f32 %v121, %v552
    %v620 = vadd.f32 %v122, %v554
    %v621 = vadd.f32 %v123, %v557
    %v622 = vadd.f32 %v124, %v559
    %v623 = vadd.f32 %v125, %v562
    %v624 = vadd.f32 %v126, %v564
    %v625 = vadd.f32 %v127, %v567
    %v626 = vadd.f32 %v128, %v569
    %v627 = vadd.f32 %v129, %v572
    %v628 = vadd.f32 %v130, %v574
    %v629 = vadd.f32 %v131, %v577
    %v630 = vadd.f32 %v132, %v579
    %v631 = vadd.f32 %v133, %v582
    %v632 = vadd.f32 %v134, %v584
    %v633 = vadd.f32 %v135, %v587
    %v634 = vadd.f32 %v136, %v589
    %v635 = vadd.f32 %v137, %v592
    %v636 = vadd.f32 %v138, %v594
    %v637 = vadd.f32 %v139, %v597
    %v638 = vadd.f32 %v140, %v599
    %v639 = vadd.f32 %v141, %v602
    %v640 = vadd.f32 %v142, %v604
    %v641 = vadd.f32 %v143, %v607
    %v642 = vadd.f32 %v144, %v609
    %643 = vst [vmem:[#allocation2] sm:$0xff] %v611
    %644 = vst [vmem:[#allocation2 + $0x8] sm:$0xff] %v612
    %645 = vst [vmem:[#allocation2 + $0x10] sm:$0xff] %v613
    %646 = vst [vmem:[#allocation2 + $0x18] sm:$0xff] %v614
    %647 = vst [vmem:[#allocation2 + $0x20] sm:$0xff] %v615
    %648 = vst [vmem:[#allocation2 + $0x28] sm:$0xff] %v616
    %649 = vst [vmem:[#allocation2 + $0x30] sm:$0xff] %v617
    %650 = vst [vmem:[#allocation2 + $0x38] sm:$0xff] %v618
    %651 = vst [vmem:[#allocation2 + $0x40] sm:$0xff] %v619
    %652 = vst [vmem:[#allocation2 + $0x48] sm:$0xff] %v620
    %653 = vst [vmem:[#allocation2 + $0x50] sm:$0xff] %v621
    %654 = vst [vmem:[#allocation2 + $0x58] sm:$0xff] %v622
    %655 = vst [vmem:[#allocation2 + $0x60] sm:$0xff] %v623
    %656 = vst [vmem:[#allocation2 + $0x68] sm:$0xff] %v624
    %657 = vst [vmem:[#allocation2 + $0x70] sm:$0xff] %v625
    %658 = vst [vmem:[#allocation2 + $0x78] sm:$0xff] %v626
    %659 = vst [vmem:[#allocation2 + $0x80] sm:$0xff] %v627
    %660 = vst [vmem:[#allocation2 + $0x88] sm:$0xff] %v628
    %661 = vst [vmem:[#allocation2 + $0x90] sm:$0xff] %v629
    %662 = vst [vmem:[#allocation2 + $0x98] sm:$0xff] %v630
    %663 = vst [vmem:[#allocation2 + $0xa0] sm:$0xff] %v631
    %664 = vst [vmem:[#allocation2 + $0xa8] sm:$0xff] %v632
    %665 = vst [vmem:[#allocation2 + $0xb0] sm:$0xff] %v633
    %666 = vst [vmem:[#allocation2 + $0xb8] sm:$0xff] %v634
    %667 = vst [vmem:[#allocation2 + $0xc0] sm:$0xff] %v635
    %668 = vst [vmem:[#allocation2 + $0xc8] sm:$0xff] %v636
    %669 = vst [vmem:[#allocation2 + $0xd0] sm:$0xff] %v637
    %670 = vst [vmem:[#allocation2 + $0xd8] sm:$0xff] %v638
    %671 = vst [vmem:[#allocation2 + $0xe0] sm:$0xff] %v639
    %672 = vst [vmem:[#allocation2 + $0xe8] sm:$0xff] %v640
    %673 = vst [vmem:[#allocation2 + $0xf0] sm:$0xff] %v641
    %674 = vst [vmem:[#allocation2 + $0xf8] sm:$0xff] %v642
    // Predicated region
    $region34: #{tpu_custom_call.1} parent=1 // pred_check
      %p675 = pneg %p40
    $region35: #{tpu_custom_call.1} parent=1 // pred_check_branch
      %677 = sbr.rel (%p675) target = $region37
    $region36: #{tpu_custom_call.1} parent=1 // pred_region
      %v678 = vld [vmem:[%s4] sm:$0x1]
      %v679 = vld [vmem:[%s4 + $0x1] sm:$0x1]
      %v680 = vld [vmem:[%s4 + $0x2] sm:$0x1]
      %v681 = vld [vmem:[%s4 + $0x3] sm:$0x1]
      %v682 = vld [vmem:[#allocation2] sm:$0xff]
      %v683 = vld [vmem:[#allocation2 + $0x8] sm:$0xff]
      %v684 = vld [vmem:[#allocation2 + $0x10] sm:$0xff]
      %v685 = vld [vmem:[#allocation2 + $0x18] sm:$0xff]
      %v686 = vld [vmem:[#allocation2 + $0x20] sm:$0xff]
      %v687 = vld [vmem:[#allocation2 + $0x28] sm:$0xff]
      %v688 = vld [vmem:[#allocation2 + $0x30] sm:$0xff]
      %v689 = vld [vmem:[#allocation2 + $0x38] sm:$0xff]
      %v690 = vld [vmem:[#allocation2 + $0x40] sm:$0xff]
      %v691 = vld [vmem:[#allocation2 + $0x48] sm:$0xff]
      %v692 = vld [vmem:[#allocation2 + $0x50] sm:$0xff]
      %v693 = vld [vmem:[#allocation2 + $0x58] sm:$0xff]
      %v694 = vld [vmem:[#allocation2 + $0x60] sm:$0xff]
      %v695 = vld [vmem:[#allocation2 + $0x68] sm:$0xff]
      %v696 = vld [vmem:[#allocation2 + $0x70] sm:$0xff]
      %v697 = vld [vmem:[#allocation2 + $0x78] sm:$0xff]
      %v698 = vld [vmem:[#allocation2 + $0x80] sm:$0xff]
      %v699 = vld [vmem:[#allocation2 + $0x88] sm:$0xff]
      %v700 = vld [vmem:[#allocation2 + $0x90] sm:$0xff]
      %v701 = vld [vmem:[#allocation2 + $0x98] sm:$0xff]
      %v702 = vld [vmem:[#allocation2 + $0xa0] sm:$0xff]
      %v703 = vld [vmem:[#allocation2 + $0xa8] sm:$0xff]
      %v704 = vld [vmem:[#allocation2 + $0xb0] sm:$0xff]
      %v705 = vld [vmem:[#allocation2 + $0xb8] sm:$0xff]
      %v706 = vld [vmem:[#allocation2 + $0xc0] sm:$0xff]
      %v707 = vld [vmem:[#allocation2 + $0xc8] sm:$0xff]
      %v708 = vld [vmem:[#allocation2 + $0xd0] sm:$0xff]
      %v709 = vld [vmem:[#allocation2 + $0xd8] sm:$0xff]
      %v710 = vld [vmem:[#allocation2 + $0xe0] sm:$0xff]
      %v711 = vld [vmem:[#allocation2 + $0xe8] sm:$0xff]
      %v712 = vld [vmem:[#allocation2 + $0xf0] sm:$0xff]
      %v713 = vld [vmem:[#allocation2 + $0xf8] sm:$0xff]
      %v714 = vld [vmem:[%s3] sm:$0xff]
      %v715 = vld [vmem:[%s3 + $0x8] sm:$0xff]
      %v716 = vld [vmem:[%s3 + $0x10] sm:$0xff]
      %v717 = vld [vmem:[%s3 + $0x18] sm:$0xff]
      %v718 = vld [vmem:[%s3 + $0x20] sm:$0xff]
      %v719 = vld [vmem:[%s3 + $0x28] sm:$0xff]
      %v720 = vld [vmem:[%s3 + $0x30] sm:$0xff]
      %v721 = vld [vmem:[%s3 + $0x38] sm:$0xff]
      %v722 = vld [vmem:[%s3 + $0x40] sm:$0xff]
      %v723 = vld [vmem:[%s3 + $0x48] sm:$0xff]
      %v724 = vld [vmem:[%s3 + $0x50] sm:$0xff]
      %v725 = vld [vmem:[%s3 + $0x58] sm:$0xff]
      %v726 = vld [vmem:[%s3 + $0x60] sm:$0xff]
      %v727 = vld [vmem:[%s3 + $0x68] sm:$0xff]
      %v728 = vld [vmem:[%s3 + $0x70] sm:$0xff]
      %v729 = vld [vmem:[%s3 + $0x78] sm:$0xff]
      %730 = vmatpush.msra.mxu0 %v729
      %731 = vmatpush.msra.mxu0 %v728
      %732 = vmatpush.msra.mxu0 %v727
      %733 = vmatpush.msra.mxu0 %v726
      %734 = vmatpush.msra.mxu0 %v725
      %735 = vmatpush.msra.mxu0 %v724
      %736 = vmatpush.msra.mxu0 %v723
      %737 = vmatpush.msra.mxu0 %v722
      %738 = vmatpush.msra.mxu0 %v721
      %739 = vmatpush.msra.mxu0 %v720
      %740 = vmatpush.msra.mxu0 %v719
      %741 = vmatpush.msra.mxu0 %v718
      %742 = vmatpush.msra.mxu0 %v717
      %743 = vmatpush.msra.mxu0 %v716
      %744 = vmatpush.msra.mxu0 %v715
      %745 = vmatpush.msra.mxu0 %v714
      %746 = vmatmul.f32.gmra.mxu0 %v682
      %v747 = vpop.f32.mrf.mxu0
      %v748 = vadd.f32 0.0, %v747
      %749 = vmatmul.f32.gmra.mxu0 %v683
      %v750 = vpop.f32.mrf.mxu0
      %v751 = vadd.f32 0.0, %v750
      %752 = vmatmul.f32.gmra.mxu0 %v684
      %v753 = vpop.f32.mrf.mxu0
      %v754 = vadd.f32 0.0, %v753
      %755 = vmatmul.f32.gmra.mxu0 %v685
      %v756 = vpop.f32.mrf.mxu0
      %v757 = vadd.f32 0.0, %v756
      %758 = vmatmul.f32.gmra.mxu0 %v686
      %v759 = vpop.f32.mrf.mxu0
      %v760 = vadd.f32 0.0, %v759
      %761 = vmatmul.f32.gmra.mxu0 %v687
      %v762 = vpop.f32.mrf.mxu0
      %v763 = vadd.f32 0.0, %v762
      %764 = vmatmul.f32.gmra.mxu0 %v688
      %v765 = vpop.f32.mrf.mxu0
      %v766 = vadd.f32 0.0, %v765
      %767 = vmatmul.f32.gmra.mxu0 %v689
      %v768 = vpop.f32.mrf.mxu0
      %v769 = vadd.f32 0.0, %v768
      %770 = vmatmul.f32.gmra.mxu0 %v690
      %v771 = vpop.f32.mrf.mxu0
      %v772 = vadd.f32 0.0, %v771
      %773 = vmatmul.f32.gmra.mxu0 %v691
      %v774 = vpop.f32.mrf.mxu0
      %v775 = vadd.f32 0.0, %v774
      %776 = vmatmul.f32.gmra.mxu0 %v692
      %v777 = vpop.f32.mrf.mxu0
      %v778 = vadd.f32 0.0, %v777
      %779 = vmatmul.f32.gmra.mxu0 %v693
      %v780 = vpop.f32.mrf.mxu0
      %v781 = vadd.f32 0.0, %v780
      %782 = vmatmul.f32.gmra.mxu0 %v694
      %v783 = vpop.f32.mrf.mxu0
      %v784 = vadd.f32 0.0, %v783
      %785 = vmatmul.f32.gmra.mxu0 %v695
      %v786 = vpop.f32.mrf.mxu0
      %v787 = vadd.f32 0.0, %v786
      %788 = vmatmul.f32.gmra.mxu0 %v696
      %v789 = vpop.f32.mrf.mxu0
      %v790 = vadd.f32 0.0, %v789
      %791 = vmatmul.f32.gmra.mxu0 %v697
      %v792 = vpop.f32.mrf.mxu0
      %v793 = vadd.f32 0.0, %v792
      %794 = vmatmul.f32.gmra.mxu0 %v698
      %v795 = vpop.f32.mrf.mxu0
      %v796 = vadd.f32 0.0, %v795
      %797 = vmatmul.f32.gmra.mxu0 %v699
      %v798 = vpop.f32.mrf.mxu0
      %v799 = vadd.f32 0.0, %v798
      %800 = vmatmul.f32.gmra.mxu0 %v700
      %v801 = vpop.f32.mrf.mxu0
      %v802 = vadd.f32 0.0, %v801
      %803 = vmatmul.f32.gmra.mxu0 %v701
      %v804 = vpop.f32.mrf.mxu0
      %v805 = vadd.f32 0.0, %v804
      %806 = vmatmul.f32.gmra.mxu0 %v702
      %v807 = vpop.f32.mrf.mxu0
      %v808 = vadd.f32 0.0, %v807
      %809 = vmatmul.f32.gmra.mxu0 %v703
      %v810 = vpop.f32.mrf.mxu0
      %v811 = vadd.f32 0.0, %v810
      %812 = vmatmul.f32.gmra.mxu0 %v704
      %v813 = vpop.f32.mrf.mxu0
      %v814 = vadd.f32 0.0, %v813
      %815 = vmatmul.f32.gmra.mxu0 %v705
      %v816 = vpop.f32.mrf.mxu0
      %v817 = vadd.f32 0.0, %v816
      %818 = vmatmul.f32.gmra.mxu0 %v706
      %v819 = vpop.f32.mrf.mxu0
      %v820 = vadd.f32 0.0, %v819
      %821 = vmatmul.f32.gmra.mxu0 %v707
      %v822 = vpop.f32.mrf.mxu0
      %v823 = vadd.f32 0.0, %v822
      %824 = vmatmul.f32.gmra.mxu0 %v708
      %v825 = vpop.f32.mrf.mxu0
      %v826 = vadd.f32 0.0, %v825
      %827 = vmatmul.f32.gmra.mxu0 %v709
      %v828 = vpop.f32.mrf.mxu0
      %v829 = vadd.f32 0.0, %v828
      %830 = vmatmul.f32.gmra.mxu0 %v710
      %v831 = vpop.f32.mrf.mxu0
      %v832 = vadd.f32 0.0, %v831
      %833 = vmatmul.f32.gmra.mxu0 %v711
      %v834 = vpop.f32.mrf.mxu0
      %v835 = vadd.f32 0.0, %v834
      %836 = vmatmul.f32.gmra.mxu0 %v712
      %v837 = vpop.f32.mrf.mxu0
      %v838 = vadd.f32 0.0, %v837
      %839 = vmatmul.f32.gmra.mxu0 %v713
      %v840 = vpop.f32.mrf.mxu0
      %v841 = vadd.f32 0.0, %v840
      %842 = vdwg.mxu0
      %v843 = vld [vmem:[%s2] sm:$0xff]
      %v844 = vld [vmem:[%s2 + $0x8] sm:$0xff]
      %v845 = vld [vmem:[%s2 + $0x10] sm:$0xff]
      %v846 = vld [vmem:[%s2 + $0x18] sm:$0xff]
      %v847 = vld [vmem:[%s2 + $0x20] sm:$0xff]
      %v848 = vld [vmem:[%s2 + $0x28] sm:$0xff]
      %v849 = vld [vmem:[%s2 + $0x30] sm:$0xff]
      %v850 = vld [vmem:[%s2 + $0x38] sm:$0xff]
      %v851 = vld [vmem:[%s2 + $0x40] sm:$0xff]
      %v852 = vld [vmem:[%s2 + $0x48] sm:$0xff]
      %v853 = vld [vmem:[%s2 + $0x50] sm:$0xff]
      %v854 = vld [vmem:[%s2 + $0x58] sm:$0xff]
      %v855 = vld [vmem:[%s2 + $0x60] sm:$0xff]
      %v856 = vld [vmem:[%s2 + $0x68] sm:$0xff]
      %v857 = vld [vmem:[%s2 + $0x70] sm:$0xff]
      %v858 = vld [vmem:[%s2 + $0x78] sm:$0xff]
      %v859 = vld [vmem:[%s2 + $0x80] sm:$0xff]
      %v860 = vld [vmem:[%s2 + $0x88] sm:$0xff]
      %v861 = vld [vmem:[%s2 + $0x90] sm:$0xff]
      %v862 = vld [vmem:[%s2 + $0x98] sm:$0xff]
      %v863 = vld [vmem:[%s2 + $0xa0] sm:$0xff]
      %v864 = vld [vmem:[%s2 + $0xa8] sm:$0xff]
      %v865 = vld [vmem:[%s2 + $0xb0] sm:$0xff]
      %v866 = vld [vmem:[%s2 + $0xb8] sm:$0xff]
      %v867 = vld [vmem:[%s2 + $0xc0] sm:$0xff]
      %v868 = vld [vmem:[%s2 + $0xc8] sm:$0xff]
      %v869 = vld [vmem:[%s2 + $0xd0] sm:$0xff]
      %v870 = vld [vmem:[%s2 + $0xd8] sm:$0xff]
      %v871 = vld [vmem:[%s2 + $0xe0] sm:$0xff]
      %v872 = vld [vmem:[%s2 + $0xe8] sm:$0xff]
      %v873 = vld [vmem:[%s2 + $0xf0] sm:$0xff]
      %v874 = vld [vmem:[%s2 + $0xf8] sm:$0xff]
      %876 = vset.pattern.permute.xlu0 0
      %877 = vperm.xlu0 %876, %v843
      %v878 = vpop.permute.xlu0 %877
      %881 = vset.pattern.permute.xlu0 0
      %882 = vperm.xlu0 %881, %v844
      %v883 = vpop.permute.xlu0 %882
      %886 = vset.pattern.permute.xlu0 0
      %887 = vperm.xlu0 %886, %v845
      %v888 = vpop.permute.xlu0 %887
      %891 = vset.pattern.permute.xlu0 0
      %892 = vperm.xlu0 %891, %v846
      %v893 = vpop.permute.xlu0 %892
      %896 = vset.pattern.permute.xlu0 0
      %897 = vperm.xlu0 %896, %v847
      %v898 = vpop.permute.xlu0 %897
      %901 = vset.pattern.permute.xlu0 0
      %902 = vperm.xlu0 %901, %v848
      %v903 = vpop.permute.xlu0 %902
      %906 = vset.pattern.permute.xlu0 0
      %907 = vperm.xlu0 %906, %v849
      %v908 = vpop.permute.xlu0 %907
      %911 = vset.pattern.permute.xlu0 0
      %912 = vperm.xlu0 %911, %v850
      %v913 = vpop.permute.xlu0 %912
      %916 = vset.pattern.permute.xlu0 0
      %917 = vperm.xlu0 %916, %v851
      %v918 = vpop.permute.xlu0 %917
      %921 = vset.pattern.permute.xlu0 0
      %922 = vperm.xlu0 %921, %v852
      %v923 = vpop.permute.xlu0 %922
      %926 = vset.pattern.permute.xlu0 0
      %927 = vperm.xlu0 %926, %v853
      %v928 = vpop.permute.xlu0 %927
      %931 = vset.pattern.permute.xlu0 0
      %932 = vperm.xlu0 %931, %v854
      %v933 = vpop.permute.xlu0 %932
      %936 = vset.pattern.permute.xlu0 0
      %937 = vperm.xlu0 %936, %v855
      %v938 = vpop.permute.xlu0 %937
      %941 = vset.pattern.permute.xlu0 0
      %942 = vperm.xlu0 %941, %v856
      %v943 = vpop.permute.xlu0 %942
      %946 = vset.pattern.permute.xlu0 0
      %947 = vperm.xlu0 %946, %v857
      %v948 = vpop.permute.xlu0 %947
      %951 = vset.pattern.permute.xlu0 0
      %952 = vperm.xlu0 %951, %v858
      %v953 = vpop.permute.xlu0 %952
      %956 = vset.pattern.permute.xlu0 0
      %957 = vperm.xlu0 %956, %v859
      %v958 = vpop.permute.xlu0 %957
      %961 = vset.pattern.permute.xlu0 0
      %962 = vperm.xlu0 %961, %v860
      %v963 = vpop.permute.xlu0 %962
      %966 = vset.pattern.permute.xlu0 0
      %967 = vperm.xlu0 %966, %v861
      %v968 = vpop.permute.xlu0 %967
      %971 = vset.pattern.permute.xlu0 0
      %972 = vperm.xlu0 %971, %v862
      %v973 = vpop.permute.xlu0 %972
      %976 = vset.pattern.permute.xlu0 0
      %977 = vperm.xlu0 %976, %v863
      %v978 = vpop.permute.xlu0 %977
      %981 = vset.pattern.permute.xlu0 0
      %982 = vperm.xlu0 %981, %v864
      %v983 = vpop.permute.xlu0 %982
      %986 = vset.pattern.permute.xlu0 0
      %987 = vperm.xlu0 %986, %v865
      %v988 = vpop.permute.xlu0 %987
      %991 = vset.pattern.permute.xlu0 0
      %992 = vperm.xlu0 %991, %v866
      %v993 = vpop.permute.xlu0 %992
      %996 = vset.pattern.permute.xlu0 0
      %997 = vperm.xlu0 %996, %v867
      %v998 = vpop.permute.xlu0 %997
      %1001 = vset.pattern.permute.xlu0 0
      %1002 = vperm.xlu0 %1001, %v868
      %v1003 = vpop.permute.xlu0 %1002
      %1006 = vset.pattern.permute.xlu0 0
      %1007 = vperm.xlu0 %1006, %v869
      %v1008 = vpop.permute.xlu0 %1007
      %1011 = vset.pattern.permute.xlu0 0
      %1012 = vperm.xlu0 %1011, %v870
      %v1013 = vpop.permute.xlu0 %1012
      %1016 = vset.pattern.permute.xlu0 0
      %1017 = vperm.xlu0 %1016, %v871
      %v1018 = vpop.permute.xlu0 %1017
      %1021 = vset.pattern.permute.xlu0 0
      %1022 = vperm.xlu0 %1021, %v872
      %v1023 = vpop.permute.xlu0 %1022
      %1026 = vset.pattern.permute.xlu0 0
      %1027 = vperm.xlu0 %1026, %v873
      %v1028 = vpop.permute.xlu0 %1027
      %1031 = vset.pattern.permute.xlu0 0
      %1032 = vperm.xlu0 %1031, %v874
      %v1033 = vpop.permute.xlu0 %1032
      %v1035 = vmul.f32 %v748, %v878
      %v1036 = vmul.f32 %v751, %v883
      %v1037 = vmul.f32 %v754, %v888
      %v1038 = vmul.f32 %v757, %v893
      %v1039 = vmul.f32 %v760, %v898
      %v1040 = vmul.f32 %v763, %v903
      %v1041 = vmul.f32 %v766, %v908
      %v1042 = vmul.f32 %v769, %v913
      %v1043 = vmul.f32 %v772, %v918
      %v1044 = vmul.f32 %v775, %v923
      %v1045 = vmul.f32 %v778, %v928
      %v1046 = vmul.f32 %v781, %v933
      %v1047 = vmul.f32 %v784, %v938
      %v1048 = vmul.f32 %v787, %v943
      %v1049 = vmul.f32 %v790, %v948
      %v1050 = vmul.f32 %v793, %v953
      %v1051 = vmul.f32 %v796, %v958
      %v1052 = vmul.f32 %v799, %v963
      %v1053 = vmul.f32 %v802, %v968
      %v1054 = vmul.f32 %v805, %v973
      %v1055 = vmul.f32 %v808, %v978
      %v1056 = vmul.f32 %v811, %v983
      %v1057 = vmul.f32 %v814, %v988
      %v1058 = vmul.f32 %v817, %v993
      %v1059 = vmul.f32 %v820, %v998
      %v1060 = vmul.f32 %v823, %v1003
      %v1061 = vmul.f32 %v826, %v1008
      %v1062 = vmul.f32 %v829, %v1013
      %v1063 = vmul.f32 %v832, %v1018
      %v1064 = vmul.f32 %v835, %v1023
      %v1065 = vmul.f32 %v838, %v1028
      %v1066 = vmul.f32 %v841, %v1033
      %v1067 = vperm.slane %v678, 0
      %v1068 = vadd.f32 %v1035, %v1067
      %v1069 = vadd.f32 %v1036, %v1067
      %v1070 = vadd.f32 %v1037, %v1067
      %v1071 = vadd.f32 %v1038, %v1067
      %v1072 = vadd.f32 %v1039, %v1067
      %v1073 = vadd.f32 %v1040, %v1067
      %v1074 = vadd.f32 %v1041, %v1067
      %v1075 = vadd.f32 %v1042, %v1067
      %v1076 = vadd.f32 %v1043, %v1067
      %v1077 = vadd.f32 %v1044, %v1067
      %v1078 = vadd.f32 %v1045, %v1067
      %v1079 = vadd.f32 %v1046, %v1067
      %v1080 = vadd.f32 %v1047, %v1067
      %v1081 = vadd.f32 %v1048, %v1067
      %v1082 = vadd.f32 %v1049, %v1067
      %v1083 = vadd.f32 %v1050, %v1067
      %v1084 = vadd.f32 %v1051, %v1067
      %v1085 = vadd.f32 %v1052, %v1067
      %v1086 = vadd.f32 %v1053, %v1067
      %v1087 = vadd.f32 %v1054, %v1067
      %v1088 = vadd.f32 %v1055, %v1067
      %v1089 = vadd.f32 %v1056, %v1067
      %v1090 = vadd.f32 %v1057, %v1067
      %v1091 = vadd.f32 %v1058, %v1067
      %v1092 = vadd.f32 %v1059, %v1067
      %v1093 = vadd.f32 %v1060, %v1067
      %v1094 = vadd.f32 %v1061, %v1067
      %v1095 = vadd.f32 %v1062, %v1067
      %v1096 = vadd.f32 %v1063, %v1067
      %v1097 = vadd.f32 %v1064, %v1067
      %v1098 = vadd.f32 %v1065, %v1067
      %v1099 = vadd.f32 %v1066, %v1067
      %1100 = vadd.xlane.f32.xlu0 %v1068
      %v1101 = vpop.xlane.xlu0 %1100
      %1102 = vadd.xlane.f32.xlu0 %v1069
      %v1103 = vpop.xlane.xlu0 %1102
      %1104 = vadd.xlane.f32.xlu0 %v1070
      %v1105 = vpop.xlane.xlu0 %1104
      %1106 = vadd.xlane.f32.xlu0 %v1071
      %v1107 = vpop.xlane.xlu0 %1106
      %1108 = vadd.xlane.f32.xlu0 %v1072
      %v1109 = vpop.xlane.xlu0 %1108
      %1110 = vadd.xlane.f32.xlu0 %v1073
      %v1111 = vpop.xlane.xlu0 %1110
      %1112 = vadd.xlane.f32.xlu0 %v1074
      %v1113 = vpop.xlane.xlu0 %1112
      %1114 = vadd.xlane.f32.xlu0 %v1075
      %v1115 = vpop.xlane.xlu0 %1114
      %1116 = vadd.xlane.f32.xlu0 %v1076
      %v1117 = vpop.xlane.xlu0 %1116
      %1118 = vadd.xlane.f32.xlu0 %v1077
      %v1119 = vpop.xlane.xlu0 %1118
      %1120 = vadd.xlane.f32.xlu0 %v1078
      %v1121 = vpop.xlane.xlu0 %1120
      %1122 = vadd.xlane.f32.xlu0 %v1079
      %v1123 = vpop.xlane.xlu0 %1122
      %1124 = vadd.xlane.f32.xlu0 %v1080
      %v1125 = vpop.xlane.xlu0 %1124
      %1126 = vadd.xlane.f32.xlu0 %v1081
      %v1127 = vpop.xlane.xlu0 %1126
      %1128 = vadd.xlane.f32.xlu0 %v1082
      %v1129 = vpop.xlane.xlu0 %1128
      %1130 = vadd.xlane.f32.xlu0 %v1083
      %v1131 = vpop.xlane.xlu0 %1130
      %1132 = vadd.xlane.f32.xlu0 %v1084
      %v1133 = vpop.xlane.xlu0 %1132
      %1134 = vadd.xlane.f32.xlu0 %v1085
      %v1135 = vpop.xlane.xlu0 %1134
      %1136 = vadd.xlane.f32.xlu0 %v1086
      %v1137 = vpop.xlane.xlu0 %1136
      %1138 = vadd.xlane.f32.xlu0 %v1087
      %v1139 = vpop.xlane.xlu0 %1138
      %1140 = vadd.xlane.f32.xlu0 %v1088
      %v1141 = vpop.xlane.xlu0 %1140
      %1142 = vadd.xlane.f32.xlu0 %v1089
      %v1143 = vpop.xlane.xlu0 %1142
      %1144 = vadd.xlane.f32.xlu0 %v1090
      %v1145 = vpop.xlane.xlu0 %1144
      %1146 = vadd.xlane.f32.xlu0 %v1091
      %v1147 = vpop.xlane.xlu0 %1146
      %1148 = vadd.xlane.f32.xlu0 %v1092
      %v1149 = vpop.xlane.xlu0 %1148
      %1150 = vadd.xlane.f32.xlu0 %v1093
      %v1151 = vpop.xlane.xlu0 %1150
      %1152 = vadd.xlane.f32.xlu0 %v1094
      %v1153 = vpop.xlane.xlu0 %1152
      %1154 = vadd.xlane.f32.xlu0 %v1095
      %v1155 = vpop.xlane.xlu0 %1154
      %1156 = vadd.xlane.f32.xlu0 %v1096
      %v1157 = vpop.xlane.xlu0 %1156
      %1158 = vadd.xlane.f32.xlu0 %v1097
      %v1159 = vpop.xlane.xlu0 %1158
      %1160 = vadd.xlane.f32.xlu0 %v1098
      %v1161 = vpop.xlane.xlu0 %1160
      %1162 = vadd.xlane.f32.xlu0 %v1099
      %v1163 = vpop.xlane.xlu0 %1162
      %v1164 = vmul.f32 %v1101, 0.03125
      %v1165 = vmul.f32 %v1103, 0.03125
      %v1166 = vmul.f32 %v1105, 0.03125
      %v1167 = vmul.f32 %v1107, 0.03125
      %v1168 = vmul.f32 %v1109, 0.03125
      %v1169 = vmul.f32 %v1111, 0.03125
      %v1170 = vmul.f32 %v1113, 0.03125
      %v1171 = vmul.f32 %v1115, 0.03125
      %v1172 = vmul.f32 %v1117, 0.03125
      %v1173 = vmul.f32 %v1119, 0.03125
      %v1174 = vmul.f32 %v1121, 0.03125
      %v1175 = vmul.f32 %v1123, 0.03125
      %v1176 = vmul.f32 %v1125, 0.03125
      %v1177 = vmul.f32 %v1127, 0.03125
      %v1178 = vmul.f32 %v1129, 0.03125
      %v1179 = vmul.f32 %v1131, 0.03125
      %v1180 = vmul.f32 %v1133, 0.03125
      %v1181 = vmul.f32 %v1135, 0.03125
      %v1182 = vmul.f32 %v1137, 0.03125
      %v1183 = vmul.f32 %v1139, 0.03125
      %v1184 = vmul.f32 %v1141, 0.03125
      %v1185 = vmul.f32 %v1143, 0.03125
      %v1186 = vmul.f32 %v1145, 0.03125
      %v1187 = vmul.f32 %v1147, 0.03125
      %v1188 = vmul.f32 %v1149, 0.03125
      %v1189 = vmul.f32 %v1151, 0.03125
      %v1190 = vmul.f32 %v1153, 0.03125
      %v1191 = vmul.f32 %v1155, 0.03125
      %v1192 = vmul.f32 %v1157, 0.03125
      %v1193 = vmul.f32 %v1159, 0.03125
      %v1194 = vmul.f32 %v1161, 0.03125
      %v1195 = vmul.f32 %v1163, 0.03125
      %v1196 = vsub.f32 %v1068, %v1164
      %v1197 = vsub.f32 %v1069, %v1165
      %v1198 = vsub.f32 %v1070, %v1166
      %v1199 = vsub.f32 %v1071, %v1167
      %v1200 = vsub.f32 %v1072, %v1168
      %v1201 = vsub.f32 %v1073, %v1169
      %v1202 = vsub.f32 %v1074, %v1170
      %v1203 = vsub.f32 %v1075, %v1171
      %v1204 = vsub.f32 %v1076, %v1172
      %v1205 = vsub.f32 %v1077, %v1173
      %v1206 = vsub.f32 %v1078, %v1174
      %v1207 = vsub.f32 %v1079, %v1175
      %v1208 = vsub.f32 %v1080, %v1176
      %v1209 = vsub.f32 %v1081, %v1177
      %v1210 = vsub.f32 %v1082, %v1178
      %v1211 = vsub.f32 %v1083, %v1179
      %v1212 = vsub.f32 %v1084, %v1180
      %v1213 = vsub.f32 %v1085, %v1181
      %v1214 = vsub.f32 %v1086, %v1182
      %v1215 = vsub.f32 %v1087, %v1183
      %v1216 = vsub.f32 %v1088, %v1184
      %v1217 = vsub.f32 %v1089, %v1185
      %v1218 = vsub.f32 %v1090, %v1186
      %v1219 = vsub.f32 %v1091, %v1187
      %v1220 = vsub.f32 %v1092, %v1188
      %v1221 = vsub.f32 %v1093, %v1189
      %v1222 = vsub.f32 %v1094, %v1190
      %v1223 = vsub.f32 %v1095, %v1191
      %v1224 = vsub.f32 %v1096, %v1192
      %v1225 = vsub.f32 %v1097, %v1193
      %v1226 = vsub.f32 %v1098, %v1194
      %v1227 = vsub.f32 %v1099, %v1195
      %v1228 = vperm.slane %v681, 0
      %v1229 = vmul.f32 %v1196, %v1228
      %v1230 = vmul.f32 %v1197, %v1228
      %v1231 = vmul.f32 %v1198, %v1228
      %v1232 = vmul.f32 %v1199, %v1228
      %v1233 = vmul.f32 %v1200, %v1228
      %v1234 = vmul.f32 %v1201, %v1228
      %v1235 = vmul.f32 %v1202, %v1228
      %v1236 = vmul.f32 %v1203, %v1228
      %v1237 = vmul.f32 %v1204, %v1228
      %v1238 = vmul.f32 %v1205, %v1228
      %v1239 = vmul.f32 %v1206, %v1228
      %v1240 = vmul.f32 %v1207, %v1228
      %v1241 = vmul.f32 %v1208, %v1228
      %v1242 = vmul.f32 %v1209, %v1228
      %v1243 = vmul.f32 %v1210, %v1228
      %v1244 = vmul.f32 %v1211, %v1228
      %v1245 = vmul.f32 %v1212, %v1228
      %v1246 = vmul.f32 %v1213, %v1228
      %v1247 = vmul.f32 %v1214, %v1228
      %v1248 = vmul.f32 %v1215, %v1228
      %v1249 = vmul.f32 %v1216, %v1228
      %v1250 = vmul.f32 %v1217, %v1228
      %v1251 = vmul.f32 %v1218, %v1228
      %v1252 = vmul.f32 %v1219, %v1228
      %v1253 = vmul.f32 %v1220, %v1228
      %v1254 = vmul.f32 %v1221, %v1228
      %v1255 = vmul.f32 %v1222, %v1228
      %v1256 = vmul.f32 %v1223, %v1228
      %v1257 = vmul.f32 %v1224, %v1228
      %v1258 = vmul.f32 %v1225, %v1228
      %v1259 = vmul.f32 %v1226, %v1228
      %v1260 = vmul.f32 %v1227, %v1228
      %v1261 = vmul.f32 %v1229, %v1229
      %v1262 = vmul.f32 %v1230, %v1230
      %v1263 = vmul.f32 %v1231, %v1231
      %v1264 = vmul.f32 %v1232, %v1232
      %v1265 = vmul.f32 %v1233, %v1233
      %v1266 = vmul.f32 %v1234, %v1234
      %v1267 = vmul.f32 %v1235, %v1235
      %v1268 = vmul.f32 %v1236, %v1236
      %v1269 = vmul.f32 %v1237, %v1237
      %v1270 = vmul.f32 %v1238, %v1238
      %v1271 = vmul.f32 %v1239, %v1239
      %v1272 = vmul.f32 %v1240, %v1240
      %v1273 = vmul.f32 %v1241, %v1241
      %v1274 = vmul.f32 %v1242, %v1242
      %v1275 = vmul.f32 %v1243, %v1243
      %v1276 = vmul.f32 %v1244, %v1244
      %v1277 = vmul.f32 %v1245, %v1245
      %v1278 = vmul.f32 %v1246, %v1246
      %v1279 = vmul.f32 %v1247, %v1247
      %v1280 = vmul.f32 %v1248, %v1248
      %v1281 = vmul.f32 %v1249, %v1249
      %v1282 = vmul.f32 %v1250, %v1250
      %v1283 = vmul.f32 %v1251, %v1251
      %v1284 = vmul.f32 %v1252, %v1252
      %v1285 = vmul.f32 %v1253, %v1253
      %v1286 = vmul.f32 %v1254, %v1254
      %v1287 = vmul.f32 %v1255, %v1255
      %v1288 = vmul.f32 %v1256, %v1256
      %v1289 = vmul.f32 %v1257, %v1257
      %v1290 = vmul.f32 %v1258, %v1258
      %v1291 = vmul.f32 %v1259, %v1259
      %v1292 = vmul.f32 %v1260, %v1260
      %1293 = vadd.xlane.f32.xlu0 %v1261
      %v1294 = vpop.xlane.xlu0 %1293
      %1295 = vadd.xlane.f32.xlu0 %v1262
      %v1296 = vpop.xlane.xlu0 %1295
      %1297 = vadd.xlane.f32.xlu0 %v1263
      %v1298 = vpop.xlane.xlu0 %1297
      %1299 = vadd.xlane.f32.xlu0 %v1264
      %v1300 = vpop.xlane.xlu0 %1299
      %1301 = vadd.xlane.f32.xlu0 %v1265
      %v1302 = vpop.xlane.xlu0 %1301
      %1303 = vadd.xlane.f32.xlu0 %v1266
      %v1304 = vpop.xlane.xlu0 %1303
      %1305 = vadd.xlane.f32.xlu0 %v1267
      %v1306 = vpop.xlane.xlu0 %1305
      %1307 = vadd.xlane.f32.xlu0 %v1268
      %v1308 = vpop.xlane.xlu0 %1307
      %1309 = vadd.xlane.f32.xlu0 %v1269
      %v1310 = vpop.xlane.xlu0 %1309
      %1311 = vadd.xlane.f32.xlu0 %v1270
      %v1312 = vpop.xlane.xlu0 %1311
      %1313 = vadd.xlane.f32.xlu0 %v1271
      %v1314 = vpop.xlane.xlu0 %1313
      %1315 = vadd.xlane.f32.xlu0 %v1272
      %v1316 = vpop.xlane.xlu0 %1315
      %1317 = vadd.xlane.f32.xlu0 %v1273
      %v1318 = vpop.xlane.xlu0 %1317
      %1319 = vadd.xlane.f32.xlu0 %v1274
      %v1320 = vpop.xlane.xlu0 %1319
      %1321 = vadd.xlane.f32.xlu0 %v1275
      %v1322 = vpop.xlane.xlu0 %1321
      %1323 = vadd.xlane.f32.xlu0 %v1276
      %v1324 = vpop.xlane.xlu0 %1323
      %1325 = vadd.xlane.f32.xlu0 %v1277
      %v1326 = vpop.xlane.xlu0 %1325
      %1327 = vadd.xlane.f32.xlu0 %v1278
      %v1328 = vpop.xlane.xlu0 %1327
      %1329 = vadd.xlane.f32.xlu0 %v1279
      %v1330 = vpop.xlane.xlu0 %1329
      %1331 = vadd.xlane.f32.xlu0 %v1280
      %v1332 = vpop.xlane.xlu0 %1331
      %1333 = vadd.xlane.f32.xlu0 %v1281
      %v1334 = vpop.xlane.xlu0 %1333
      %1335 = vadd.xlane.f32.xlu0 %v1282
      %v1336 = vpop.xlane.xlu0 %1335
      %1337 = vadd.xlane.f32.xlu0 %v1283
      %v1338 = vpop.xlane.xlu0 %1337
      %1339 = vadd.xlane.f32.xlu0 %v1284
      %v1340 = vpop.xlane.xlu0 %1339
      %1341 = vadd.xlane.f32.xlu0 %v1285
      %v1342 = vpop.xlane.xlu0 %1341
      %1343 = vadd.xlane.f32.xlu0 %v1286
      %v1344 = vpop.xlane.xlu0 %1343
      %1345 = vadd.xlane.f32.xlu0 %v1287
      %v1346 = vpop.xlane.xlu0 %1345
      %1347 = vadd.xlane.f32.xlu0 %v1288
      %v1348 = vpop.xlane.xlu0 %1347
      %1349 = vadd.xlane.f32.xlu0 %v1289
      %v1350 = vpop.xlane.xlu0 %1349
      %1351 = vadd.xlane.f32.xlu0 %v1290
      %v1352 = vpop.xlane.xlu0 %1351
      %1353 = vadd.xlane.f32.xlu0 %v1291
      %v1354 = vpop.xlane.xlu0 %1353
      %1355 = vadd.xlane.f32.xlu0 %v1292
      %v1356 = vpop.xlane.xlu0 %1355
      %v1357 = vmul.f32 %v1294, 0.03125
      %v1358 = vmul.f32 %v1296, 0.03125
      %v1359 = vmul.f32 %v1298, 0.03125
      %v1360 = vmul.f32 %v1300, 0.03125
      %v1361 = vmul.f32 %v1302, 0.03125
      %v1362 = vmul.f32 %v1304, 0.03125
      %v1363 = vmul.f32 %v1306, 0.03125
      %v1364 = vmul.f32 %v1308, 0.03125
      %v1365 = vmul.f32 %v1310, 0.03125
      %v1366 = vmul.f32 %v1312, 0.03125
      %v1367 = vmul.f32 %v1314, 0.03125
      %v1368 = vmul.f32 %v1316, 0.03125
      %v1369 = vmul.f32 %v1318, 0.03125
      %v1370 = vmul.f32 %v1320, 0.03125
      %v1371 = vmul.f32 %v1322, 0.03125
      %v1372 = vmul.f32 %v1324, 0.03125
      %v1373 = vmul.f32 %v1326, 0.03125
      %v1374 = vmul.f32 %v1328, 0.03125
      %v1375 = vmul.f32 %v1330, 0.03125
      %v1376 = vmul.f32 %v1332, 0.03125
      %v1377 = vmul.f32 %v1334, 0.03125
      %v1378 = vmul.f32 %v1336, 0.03125
      %v1379 = vmul.f32 %v1338, 0.03125
      %v1380 = vmul.f32 %v1340, 0.03125
      %v1381 = vmul.f32 %v1342, 0.03125
      %v1382 = vmul.f32 %v1344, 0.03125
      %v1383 = vmul.f32 %v1346, 0.03125
      %v1384 = vmul.f32 %v1348, 0.03125
      %v1385 = vmul.f32 %v1350, 0.03125
      %v1386 = vmul.f32 %v1352, 0.03125
      %v1387 = vmul.f32 %v1354, 0.03125
      %v1388 = vmul.f32 %v1356, 0.03125
      %v1389 = vadd.f32 %v1357, 1e-05
      %v1390 = vadd.f32 %v1358, 1e-05
      %v1391 = vadd.f32 %v1359, 1e-05
      %v1392 = vadd.f32 %v1360, 1e-05
      %v1393 = vadd.f32 %v1361, 1e-05
      %v1394 = vadd.f32 %v1362, 1e-05
      %v1395 = vadd.f32 %v1363, 1e-05
      %v1396 = vadd.f32 %v1364, 1e-05
      %v1397 = vadd.f32 %v1365, 1e-05
      %v1398 = vadd.f32 %v1366, 1e-05
      %v1399 = vadd.f32 %v1367, 1e-05
      %v1400 = vadd.f32 %v1368, 1e-05
      %v1401 = vadd.f32 %v1369, 1e-05
      %v1402 = vadd.f32 %v1370, 1e-05
      %v1403 = vadd.f32 %v1371, 1e-05
      %v1404 = vadd.f32 %v1372, 1e-05
      %v1405 = vadd.f32 %v1373, 1e-05
      %v1406 = vadd.f32 %v1374, 1e-05
      %v1407 = vadd.f32 %v1375, 1e-05
      %v1408 = vadd.f32 %v1376, 1e-05
      %v1409 = vadd.f32 %v1377, 1e-05
      %v1410 = vadd.f32 %v1378, 1e-05
      %v1411 = vadd.f32 %v1379, 1e-05
      %v1412 = vadd.f32 %v1380, 1e-05
      %v1413 = vadd.f32 %v1381, 1e-05
      %v1414 = vadd.f32 %v1382, 1e-05
      %v1415 = vadd.f32 %v1383, 1e-05
      %v1416 = vadd.f32 %v1384, 1e-05
      %v1417 = vadd.f32 %v1385, 1e-05
      %v1418 = vadd.f32 %v1386, 1e-05
      %v1419 = vadd.f32 %v1387, 1e-05
      %v1420 = vadd.f32 %v1388, 1e-05
      %v1421 = vrsqrt.pop %v1389
      %v1422 = vmul.f32 %v1421, %v1389
      %v1423 = vmul.f32 %v1422, %v1421
      %v1424 = vmul.f32 0.5, %v1423
      %v1425 = vsub.f32 1.5, %v1424
      %v1426 = vmul.f32 %v1421, %v1425
      %vm1427 = vweird.f32 %v1389
      %vm1428 = vweird.f32 %v1421
      %vm1429 = vmor %vm1427, %vm1428
      %v1430 = vsel %vm1429, %v1421, %v1426
      %v1431 = vrsqrt.pop %v1390
      %v1432 = vmul.f32 %v1431, %v1390
      %v1433 = vmul.f32 %v1432, %v1431
      %v1434 = vmul.f32 0.5, %v1433
      %v1435 = vsub.f32 1.5, %v1434
      %v1436 = vmul.f32 %v1431, %v1435
      %vm1437 = vweird.f32 %v1390
      %vm1438 = vweird.f32 %v1431
      %vm1439 = vmor %vm1437, %vm1438
      %v1440 = vsel %vm1439, %v1431, %v1436
      %v1441 = vrsqrt.pop %v1391
      %v1442 = vmul.f32 %v1441, %v1391
      %v1443 = vmul.f32 %v1442, %v1441
      %v1444 = vmul.f32 0.5, %v1443
      %v1445 = vsub.f32 1.5, %v1444
      %v1446 = vmul.f32 %v1441, %v1445
      %vm1447 = vweird.f32 %v1391
      %vm1448 = vweird.f32 %v1441
      %vm1449 = vmor %vm1447, %vm1448
      %v1450 = vsel %vm1449, %v1441, %v1446
      %v1451 = vrsqrt.pop %v1392
      %v1452 = vmul.f32 %v1451, %v1392
      %v1453 = vmul.f32 %v1452, %v1451
      %v1454 = vmul.f32 0.5, %v1453
      %v1455 = vsub.f32 1.5, %v1454
      %v1456 = vmul.f32 %v1451, %v1455
      %vm1457 = vweird.f32 %v1392
      %vm1458 = vweird.f32 %v1451
      %vm1459 = vmor %vm1457, %vm1458
      %v1460 = vsel %vm1459, %v1451, %v1456
      %v1461 = vrsqrt.pop %v1393
      %v1462 = vmul.f32 %v1461, %v1393
      %v1463 = vmul.f32 %v1462, %v1461
      %v1464 = vmul.f32 0.5, %v1463
      %v1465 = vsub.f32 1.5, %v1464
      %v1466 = vmul.f32 %v1461, %v1465
      %vm1467 = vweird.f32 %v1393
      %vm1468 = vweird.f32 %v1461
      %vm1469 = vmor %vm1467, %vm1468
      %v1470 = vsel %vm1469, %v1461, %v1466
      %v1471 = vrsqrt.pop %v1394
      %v1472 = vmul.f32 %v1471, %v1394
      %v1473 = vmul.f32 %v1472, %v1471
      %v1474 = vmul.f32 0.5, %v1473
      %v1475 = vsub.f32 1.5, %v1474
      %v1476 = vmul.f32 %v1471, %v1475
      %vm1477 = vweird.f32 %v1394
      %vm1478 = vweird.f32 %v1471
      %vm1479 = vmor %vm1477, %vm1478
      %v1480 = vsel %vm1479, %v1471, %v1476
      %v1481 = vrsqrt.pop %v1395
      %v1482 = vmul.f32 %v1481, %v1395
      %v1483 = vmul.f32 %v1482, %v1481
      %v1484 = vmul.f32 0.5, %v1483
      %v1485 = vsub.f32 1.5, %v1484
      %v1486 = vmul.f32 %v1481, %v1485
      %vm1487 = vweird.f32 %v1395
      %vm1488 = vweird.f32 %v1481
      %vm1489 = vmor %vm1487, %vm1488
      %v1490 = vsel %vm1489, %v1481, %v1486
      %v1491 = vrsqrt.pop %v1396
      %v1492 = vmul.f32 %v1491, %v1396
      %v1493 = vmul.f32 %v1492, %v1491
      %v1494 = vmul.f32 0.5, %v1493
      %v1495 = vsub.f32 1.5, %v1494
      %v1496 = vmul.f32 %v1491, %v1495
      %vm1497 = vweird.f32 %v1396
      %vm1498 = vweird.f32 %v1491
      %vm1499 = vmor %vm1497, %vm1498
      %v1500 = vsel %vm1499, %v1491, %v1496
      %v1501 = vrsqrt.pop %v1397
      %v1502 = vmul.f32 %v1501, %v1397
      %v1503 = vmul.f32 %v1502, %v1501
      %v1504 = vmul.f32 0.5, %v1503
      %v1505 = vsub.f32 1.5, %v1504
      %v1506 = vmul.f32 %v1501, %v1505
      %vm1507 = vweird.f32 %v1397
      %vm1508 = vweird.f32 %v1501
      %vm1509 = vmor %vm1507, %vm1508
      %v1510 = vsel %vm1509, %v1501, %v1506
      %v1511 = vrsqrt.pop %v1398
      %v1512 = vmul.f32 %v1511, %v1398
      %v1513 = vmul.f32 %v1512, %v1511
      %v1514 = vmul.f32 0.5, %v1513
      %v1515 = vsub.f32 1.5, %v1514
      %v1516 = vmul.f32 %v1511, %v1515
      %vm1517 = vweird.f32 %v1398
      %vm1518 = vweird.f32 %v1511
      %vm1519 = vmor %vm1517, %vm1518
      %v1520 = vsel %vm1519, %v1511, %v1516
      %v1521 = vrsqrt.pop %v1399
      %v1522 = vmul.f32 %v1521, %v1399
      %v1523 = vmul.f32 %v1522, %v1521
      %v1524 = vmul.f32 0.5, %v1523
      %v1525 = vsub.f32 1.5, %v1524
      %v1526 = vmul.f32 %v1521, %v1525
      %vm1527 = vweird.f32 %v1399
      %vm1528 = vweird.f32 %v1521
      %vm1529 = vmor %vm1527, %vm1528
      %v1530 = vsel %vm1529, %v1521, %v1526
      %v1531 = vrsqrt.pop %v1400
      %v1532 = vmul.f32 %v1531, %v1400
      %v1533 = vmul.f32 %v1532, %v1531
      %v1534 = vmul.f32 0.5, %v1533
      %v1535 = vsub.f32 1.5, %v1534
      %v1536 = vmul.f32 %v1531, %v1535
      %vm1537 = vweird.f32 %v1400
      %vm1538 = vweird.f32 %v1531
      %vm1539 = vmor %vm1537, %vm1538
      %v1540 = vsel %vm1539, %v1531, %v1536
      %v1541 = vrsqrt.pop %v1401
      %v1542 = vmul.f32 %v1541, %v1401
      %v1543 = vmul.f32 %v1542, %v1541
      %v1544 = vmul.f32 0.5, %v1543
      %v1545 = vsub.f32 1.5, %v1544
      %v1546 = vmul.f32 %v1541, %v1545
      %vm1547 = vweird.f32 %v1401
      %vm1548 = vweird.f32 %v1541
      %vm1549 = vmor %vm1547, %vm1548
      %v1550 = vsel %vm1549, %v1541, %v1546
      %v1551 = vrsqrt.pop %v1402
      %v1552 = vmul.f32 %v1551, %v1402
      %v1553 = vmul.f32 %v1552, %v1551
      %v1554 = vmul.f32 0.5, %v1553
      %v1555 = vsub.f32 1.5, %v1554
      %v1556 = vmul.f32 %v1551, %v1555
      %vm1557 = vweird.f32 %v1402
      %vm1558 = vweird.f32 %v1551
      %vm1559 = vmor %vm1557, %vm1558
      %v1560 = vsel %vm1559, %v1551, %v1556
      %v1561 = vrsqrt.pop %v1403
      %v1562 = vmul.f32 %v1561, %v1403
      %v1563 = vmul.f32 %v1562, %v1561
      %v1564 = vmul.f32 0.5, %v1563
      %v1565 = vsub.f32 1.5, %v1564
      %v1566 = vmul.f32 %v1561, %v1565
      %vm1567 = vweird.f32 %v1403
      %vm1568 = vweird.f32 %v1561
      %vm1569 = vmor %vm1567, %vm1568
      %v1570 = vsel %vm1569, %v1561, %v1566
      %v1571 = vrsqrt.pop %v1404
      %v1572 = vmul.f32 %v1571, %v1404
      %v1573 = vmul.f32 %v1572, %v1571
      %v1574 = vmul.f32 0.5, %v1573
      %v1575 = vsub.f32 1.5, %v1574
      %v1576 = vmul.f32 %v1571, %v1575
      %vm1577 = vweird.f32 %v1404
      %vm1578 = vweird.f32 %v1571
      %vm1579 = vmor %vm1577, %vm1578
      %v1580 = vsel %vm1579, %v1571, %v1576
      %v1581 = vrsqrt.pop %v1405
      %v1582 = vmul.f32 %v1581, %v1405
      %v1583 = vmul.f32 %v1582, %v1581
      %v1584 = vmul.f32 0.5, %v1583
      %v1585 = vsub.f32 1.5, %v1584
      %v1586 = vmul.f32 %v1581, %v1585
      %vm1587 = vweird.f32 %v1405
      %vm1588 = vweird.f32 %v1581
      %vm1589 = vmor %vm1587, %vm1588
      %v1590 = vsel %vm1589, %v1581, %v1586
      %v1591 = vrsqrt.pop %v1406
      %v1592 = vmul.f32 %v1591, %v1406
      %v1593 = vmul.f32 %v1592, %v1591
      %v1594 = vmul.f32 0.5, %v1593
      %v1595 = vsub.f32 1.5, %v1594
      %v1596 = vmul.f32 %v1591, %v1595
      %vm1597 = vweird.f32 %v1406
      %vm1598 = vweird.f32 %v1591
      %vm1599 = vmor %vm1597, %vm1598
      %v1600 = vsel %vm1599, %v1591, %v1596
      %v1601 = vrsqrt.pop %v1407
      %v1602 = vmul.f32 %v1601, %v1407
      %v1603 = vmul.f32 %v1602, %v1601
      %v1604 = vmul.f32 0.5, %v1603
      %v1605 = vsub.f32 1.5, %v1604
      %v1606 = vmul.f32 %v1601, %v1605
      %vm1607 = vweird.f32 %v1407
      %vm1608 = vweird.f32 %v1601
      %vm1609 = vmor %vm1607, %vm1608
      %v1610 = vsel %vm1609, %v1601, %v1606
      %v1611 = vrsqrt.pop %v1408
      %v1612 = vmul.f32 %v1611, %v1408
      %v1613 = vmul.f32 %v1612, %v1611
      %v1614 = vmul.f32 0.5, %v1613
      %v1615 = vsub.f32 1.5, %v1614
      %v1616 = vmul.f32 %v1611, %v1615
      %vm1617 = vweird.f32 %v1408
      %vm1618 = vweird.f32 %v1611
      %vm1619 = vmor %vm1617, %vm1618
      %v1620 = vsel %vm1619, %v1611, %v1616
      %v1621 = vrsqrt.pop %v1409
      %v1622 = vmul.f32 %v1621, %v1409
      %v1623 = vmul.f32 %v1622, %v1621
      %v1624 = vmul.f32 0.5, %v1623
      %v1625 = vsub.f32 1.5, %v1624
      %v1626 = vmul.f32 %v1621, %v1625
      %vm1627 = vweird.f32 %v1409
      %vm1628 = vweird.f32 %v1621
      %vm1629 = vmor %vm1627, %vm1628
      %v1630 = vsel %vm1629, %v1621, %v1626
      %v1631 = vrsqrt.pop %v1410
      %v1632 = vmul.f32 %v1631, %v1410
      %v1633 = vmul.f32 %v1632, %v1631
      %v1634 = vmul.f32 0.5, %v1633
      %v1635 = vsub.f32 1.5, %v1634
      %v1636 = vmul.f32 %v1631, %v1635
      %vm1637 = vweird.f32 %v1410
      %vm1638 = vweird.f32 %v1631
      %vm1639 = vmor %vm1637, %vm1638
      %v1640 = vsel %vm1639, %v1631, %v1636
      %v1641 = vrsqrt.pop %v1411
      %v1642 = vmul.f32 %v1641, %v1411
      %v1643 = vmul.f32 %v1642, %v1641
      %v1644 = vmul.f32 0.5, %v1643
      %v1645 = vsub.f32 1.5, %v1644
      %v1646 = vmul.f32 %v1641, %v1645
      %vm1647 = vweird.f32 %v1411
      %vm1648 = vweird.f32 %v1641
      %vm1649 = vmor %vm1647, %vm1648
      %v1650 = vsel %vm1649, %v1641, %v1646
      %v1651 = vrsqrt.pop %v1412
      %v1652 = vmul.f32 %v1651, %v1412
      %v1653 = vmul.f32 %v1652, %v1651
      %v1654 = vmul.f32 0.5, %v1653
      %v1655 = vsub.f32 1.5, %v1654
      %v1656 = vmul.f32 %v1651, %v1655
      %vm1657 = vweird.f32 %v1412
      %vm1658 = vweird.f32 %v1651
      %vm1659 = vmor %vm1657, %vm1658
      %v1660 = vsel %vm1659, %v1651, %v1656
      %v1661 = vrsqrt.pop %v1413
      %v1662 = vmul.f32 %v1661, %v1413
      %v1663 = vmul.f32 %v1662, %v1661
      %v1664 = vmul.f32 0.5, %v1663
      %v1665 = vsub.f32 1.5, %v1664
      %v1666 = vmul.f32 %v1661, %v1665
      %vm1667 = vweird.f32 %v1413
      %vm1668 = vweird.f32 %v1661
      %vm1669 = vmor %vm1667, %vm1668
      %v1670 = vsel %vm1669, %v1661, %v1666
      %v1671 = vrsqrt.pop %v1414
      %v1672 = vmul.f32 %v1671, %v1414
      %v1673 = vmul.f32 %v1672, %v1671
      %v1674 = vmul.f32 0.5, %v1673
      %v1675 = vsub.f32 1.5, %v1674
      %v1676 = vmul.f32 %v1671, %v1675
      %vm1677 = vweird.f32 %v1414
      %vm1678 = vweird.f32 %v1671
      %vm1679 = vmor %vm1677, %vm1678
      %v1680 = vsel %vm1679, %v1671, %v1676
      %v1681 = vrsqrt.pop %v1415
      %v1682 = vmul.f32 %v1681, %v1415
      %v1683 = vmul.f32 %v1682, %v1681
      %v1684 = vmul.f32 0.5, %v1683
      %v1685 = vsub.f32 1.5, %v1684
      %v1686 = vmul.f32 %v1681, %v1685
      %vm1687 = vweird.f32 %v1415
      %vm1688 = vweird.f32 %v1681
      %vm1689 = vmor %vm1687, %vm1688
      %v1690 = vsel %vm1689, %v1681, %v1686
      %v1691 = vrsqrt.pop %v1416
      %v1692 = vmul.f32 %v1691, %v1416
      %v1693 = vmul.f32 %v1692, %v1691
      %v1694 = vmul.f32 0.5, %v1693
      %v1695 = vsub.f32 1.5, %v1694
      %v1696 = vmul.f32 %v1691, %v1695
      %vm1697 = vweird.f32 %v1416
      %vm1698 = vweird.f32 %v1691
      %vm1699 = vmor %vm1697, %vm1698
      %v1700 = vsel %vm1699, %v1691, %v1696
      %v1701 = vrsqrt.pop %v1417
      %v1702 = vmul.f32 %v1701, %v1417
      %v1703 = vmul.f32 %v1702, %v1701
      %v1704 = vmul.f32 0.5, %v1703
      %v1705 = vsub.f32 1.5, %v1704
      %v1706 = vmul.f32 %v1701, %v1705
      %vm1707 = vweird.f32 %v1417
      %vm1708 = vweird.f32 %v1701
      %vm1709 = vmor %vm1707, %vm1708
      %v1710 = vsel %vm1709, %v1701, %v1706
      %v1711 = vrsqrt.pop %v1418
      %v1712 = vmul.f32 %v1711, %v1418
      %v1713 = vmul.f32 %v1712, %v1711
      %v1714 = vmul.f32 0.5, %v1713
      %v1715 = vsub.f32 1.5, %v1714
      %v1716 = vmul.f32 %v1711, %v1715
      %vm1717 = vweird.f32 %v1418
      %vm1718 = vweird.f32 %v1711
      %vm1719 = vmor %vm1717, %vm1718
      %v1720 = vsel %vm1719, %v1711, %v1716
      %v1721 = vrsqrt.pop %v1419
      %v1722 = vmul.f32 %v1721, %v1419
      %v1723 = vmul.f32 %v1722, %v1721
      %v1724 = vmul.f32 0.5, %v1723
      %v1725 = vsub.f32 1.5, %v1724
      %v1726 = vmul.f32 %v1721, %v1725
      %vm1727 = vweird.f32 %v1419
      %vm1728 = vweird.f32 %v1721
      %vm1729 = vmor %vm1727, %vm1728
      %v1730 = vsel %vm1729, %v1721, %v1726
      %v1731 = vrsqrt.pop %v1420
      %v1732 = vmul.f32 %v1731, %v1420
      %v1733 = vmul.f32 %v1732, %v1731
      %v1734 = vmul.f32 0.5, %v1733
      %v1735 = vsub.f32 1.5, %v1734
      %v1736 = vmul.f32 %v1731, %v1735
      %vm1737 = vweird.f32 %v1420
      %vm1738 = vweird.f32 %v1731
      %vm1739 = vmor %vm1737, %vm1738
      %v1740 = vsel %vm1739, %v1731, %v1736
      %v1741 = vmul.f32 %v1229, %v1430
      %v1742 = vmul.f32 %v1230, %v1440
      %v1743 = vmul.f32 %v1231, %v1450
      %v1744 = vmul.f32 %v1232, %v1460
      %v1745 = vmul.f32 %v1233, %v1470
      %v1746 = vmul.f32 %v1234, %v1480
      %v1747 = vmul.f32 %v1235, %v1490
      %v1748 = vmul.f32 %v1236, %v1500
      %v1749 = vmul.f32 %v1237, %v1510
      %v1750 = vmul.f32 %v1238, %v1520
      %v1751 = vmul.f32 %v1239, %v1530
      %v1752 = vmul.f32 %v1240, %v1540
      %v1753 = vmul.f32 %v1241, %v1550
      %v1754 = vmul.f32 %v1242, %v1560
      %v1755 = vmul.f32 %v1243, %v1570
      %v1756 = vmul.f32 %v1244, %v1580
      %v1757 = vmul.f32 %v1245, %v1590
      %v1758 = vmul.f32 %v1246, %v1600
      %v1759 = vmul.f32 %v1247, %v1610
      %v1760 = vmul.f32 %v1248, %v1620
      %v1761 = vmul.f32 %v1249, %v1630
      %v1762 = vmul.f32 %v1250, %v1640
      %v1763 = vmul.f32 %v1251, %v1650
      %v1764 = vmul.f32 %v1252, %v1660
      %v1765 = vmul.f32 %v1253, %v1670
      %v1766 = vmul.f32 %v1254, %v1680
      %v1767 = vmul.f32 %v1255, %v1690
      %v1768 = vmul.f32 %v1256, %v1700
      %v1769 = vmul.f32 %v1257, %v1710
      %v1770 = vmul.f32 %v1258, %v1720
      %v1771 = vmul.f32 %v1259, %v1730
      %v1772 = vmul.f32 %v1260, %v1740
      %v1773 = vperm.slane %v679, 0
      %v1774 = vmul.f32 %v1741, %v1773
      %v1775 = vmul.f32 %v1742, %v1773
      %v1776 = vmul.f32 %v1743, %v1773
      %v1777 = vmul.f32 %v1744, %v1773
      %v1778 = vmul.f32 %v1745, %v1773
      %v1779 = vmul.f32 %v1746, %v1773
      %v1780 = vmul.f32 %v1747, %v1773
      %v1781 = vmul.f32 %v1748, %v1773
      %v1782 = vmul.f32 %v1749, %v1773
      %v1783 = vmul.f32 %v1750, %v1773
      %v1784 = vmul.f32 %v1751, %v1773
      %v1785 = vmul.f32 %v1752, %v1773
      %v1786 = vmul.f32 %v1753, %v1773
      %v1787 = vmul.f32 %v1754, %v1773
      %v1788 = vmul.f32 %v1755, %v1773
      %v1789 = vmul.f32 %v1756, %v1773
      %v1790 = vmul.f32 %v1757, %v1773
      %v1791 = vmul.f32 %v1758, %v1773
      %v1792 = vmul.f32 %v1759, %v1773
      %v1793 = vmul.f32 %v1760, %v1773
      %v1794 = vmul.f32 %v1761, %v1773
      %v1795 = vmul.f32 %v1762, %v1773
      %v1796 = vmul.f32 %v1763, %v1773
      %v1797 = vmul.f32 %v1764, %v1773
      %v1798 = vmul.f32 %v1765, %v1773
      %v1799 = vmul.f32 %v1766, %v1773
      %v1800 = vmul.f32 %v1767, %v1773
      %v1801 = vmul.f32 %v1768, %v1773
      %v1802 = vmul.f32 %v1769, %v1773
      %v1803 = vmul.f32 %v1770, %v1773
      %v1804 = vmul.f32 %v1771, %v1773
      %v1805 = vmul.f32 %v1772, %v1773
      %v1806 = vperm.slane %v680, 0
      %v1807 = vadd.f32 %v1774, %v1806
      %v1808 = vadd.f32 %v1775, %v1806
      %v1809 = vadd.f32 %v1776, %v1806
      %v1810 = vadd.f32 %v1777, %v1806
      %v1811 = vadd.f32 %v1778, %v1806
      %v1812 = vadd.f32 %v1779, %v1806
      %v1813 = vadd.f32 %v1780, %v1806
      %v1814 = vadd.f32 %v1781, %v1806
      %v1815 = vadd.f32 %v1782, %v1806
      %v1816 = vadd.f32 %v1783, %v1806
      %v1817 = vadd.f32 %v1784, %v1806
      %v1818 = vadd.f32 %v1785, %v1806
      %v1819 = vadd.f32 %v1786, %v1806
      %v1820 = vadd.f32 %v1787, %v1806
      %v1821 = vadd.f32 %v1788, %v1806
      %v1822 = vadd.f32 %v1789, %v1806
      %v1823 = vadd.f32 %v1790, %v1806
      %v1824 = vadd.f32 %v1791, %v1806
      %v1825 = vadd.f32 %v1792, %v1806
      %v1826 = vadd.f32 %v1793, %v1806
      %v1827 = vadd.f32 %v1794, %v1806
      %v1828 = vadd.f32 %v1795, %v1806
      %v1829 = vadd.f32 %v1796, %v1806
      %v1830 = vadd.f32 %v1797, %v1806
      %v1831 = vadd.f32 %v1798, %v1806
      %v1832 = vadd.f32 %v1799, %v1806
      %v1833 = vadd.f32 %v1800, %v1806
      %v1834 = vadd.f32 %v1801, %v1806
      %v1835 = vadd.f32 %v1802, %v1806
      %v1836 = vadd.f32 %v1803, %v1806
      %v1837 = vadd.f32 %v1804, %v1806
      %v1838 = vadd.f32 %v1805, %v1806
      %v1839 = vld [vmem:[#allocation3] sm:$0xff]
      %v1840 = vld [vmem:[#allocation3 + $0x8] sm:$0xff]
      %v1841 = vld [vmem:[#allocation3 + $0x10] sm:$0xff]
      %v1842 = vld [vmem:[#allocation3 + $0x18] sm:$0xff]
      %v1843 = vld [vmem:[#allocation3 + $0x20] sm:$0xff]
      %v1844 = vld [vmem:[#allocation3 + $0x28] sm:$0xff]
      %v1845 = vld [vmem:[#allocation3 + $0x30] sm:$0xff]
      %v1846 = vld [vmem:[#allocation3 + $0x38] sm:$0xff]
      %v1847 = vld [vmem:[#allocation3 + $0x40] sm:$0xff]
      %v1848 = vld [vmem:[#allocation3 + $0x48] sm:$0xff]
      %v1849 = vld [vmem:[#allocation3 + $0x50] sm:$0xff]
      %v1850 = vld [vmem:[#allocation3 + $0x58] sm:$0xff]
      %v1851 = vld [vmem:[#allocation3 + $0x60] sm:$0xff]
      %v1852 = vld [vmem:[#allocation3 + $0x68] sm:$0xff]
      %v1853 = vld [vmem:[#allocation3 + $0x70] sm:$0xff]
      %v1854 = vld [vmem:[#allocation3 + $0x78] sm:$0xff]
      %v1855 = vld [vmem:[#allocation3 + $0x80] sm:$0xff]
      %v1856 = vld [vmem:[#allocation3 + $0x88] sm:$0xff]
      %v1857 = vld [vmem:[#allocation3 + $0x90] sm:$0xff]
      %v1858 = vld [vmem:[#allocation3 + $0x98] sm:$0xff]
      %v1859 = vld [vmem:[#allocation3 + $0xa0] sm:$0xff]
      %v1860 = vld [vmem:[#allocation3 + $0xa8] sm:$0xff]
      %v1861 = vld [vmem:[#allocation3 + $0xb0] sm:$0xff]
      %v1862 = vld [vmem:[#allocation3 + $0xb8] sm:$0xff]
      %v1863 = vld [vmem:[#allocation3 + $0xc0] sm:$0xff]
      %v1864 = vld [vmem:[#allocation3 + $0xc8] sm:$0xff]
      %v1865 = vld [vmem:[#allocation3 + $0xd0] sm:$0xff]
      %v1866 = vld [vmem:[#allocation3 + $0xd8] sm:$0xff]
      %v1867 = vld [vmem:[#allocation3 + $0xe0] sm:$0xff]
      %v1868 = vld [vmem:[#allocation3 + $0xe8] sm:$0xff]
      %v1869 = vld [vmem:[#allocation3 + $0xf0] sm:$0xff]
      %v1870 = vld [vmem:[#allocation3 + $0xf8] sm:$0xff]
      %v1871 = vmax.f32 %v1807, 0.0
      %v1872 = vmax.f32 %v1808, 0.0
      %v1873 = vmax.f32 %v1809, 0.0
      %v1874 = vmax.f32 %v1810, 0.0
      %v1875 = vmax.f32 %v1811, 0.0
      %v1876 = vmax.f32 %v1812, 0.0
      %v1877 = vmax.f32 %v1813, 0.0
      %v1878 = vmax.f32 %v1814, 0.0
      %v1879 = vmax.f32 %v1815, 0.0
      %v1880 = vmax.f32 %v1816, 0.0
      %v1881 = vmax.f32 %v1817, 0.0
      %v1882 = vmax.f32 %v1818, 0.0
      %v1883 = vmax.f32 %v1819, 0.0
      %v1884 = vmax.f32 %v1820, 0.0
      %v1885 = vmax.f32 %v1821, 0.0
      %v1886 = vmax.f32 %v1822, 0.0
      %v1887 = vmax.f32 %v1823, 0.0
      %v1888 = vmax.f32 %v1824, 0.0
      %v1889 = vmax.f32 %v1825, 0.0
      %v1890 = vmax.f32 %v1826, 0.0
      %v1891 = vmax.f32 %v1827, 0.0
      %v1892 = vmax.f32 %v1828, 0.0
      %v1893 = vmax.f32 %v1829, 0.0
      %v1894 = vmax.f32 %v1830, 0.0
      %v1895 = vmax.f32 %v1831, 0.0
      %v1896 = vmax.f32 %v1832, 0.0
      %v1897 = vmax.f32 %v1833, 0.0
      %v1898 = vmax.f32 %v1834, 0.0
      %v1899 = vmax.f32 %v1835, 0.0
      %v1900 = vmax.f32 %v1836, 0.0
      %v1901 = vmax.f32 %v1837, 0.0
      %v1902 = vmax.f32 %v1838, 0.0
      %v1903 = vadd.f32 %v1839, %v1871
      %v1904 = vadd.f32 %v1840, %v1872
      %v1905 = vadd.f32 %v1841, %v1873
      %v1906 = vadd.f32 %v1842, %v1874
      %v1907 = vadd.f32 %v1843, %v1875
      %v1908 = vadd.f32 %v1844, %v1876
      %v1909 = vadd.f32 %v1845, %v1877
      %v1910 = vadd.f32 %v1846, %v1878
      %v1911 = vadd.f32 %v1847, %v1879
      %v1912 = vadd.f32 %v1848, %v1880
      %v1913 = vadd.f32 %v1849, %v1881
      %v1914 = vadd.f32 %v1850, %v1882
      %v1915 = vadd.f32 %v1851, %v1883
      %v1916 = vadd.f32 %v1852, %v1884
      %v1917 = vadd.f32 %v1853, %v1885
      %v1918 = vadd.f32 %v1854, %v1886
      %v1919 = vadd.f32 %v1855, %v1887
      %v1920 = vadd.f32 %v1856, %v1888
      %v1921 = vadd.f32 %v1857, %v1889
      %v1922 = vadd.f32 %v1858, %v1890
      %v1923 = vadd.f32 %v1859, %v1891
      %v1924 = vadd.f32 %v1860, %v1892
      %v1925 = vadd.f32 %v1861, %v1893
      %v1926 = vadd.f32 %v1862, %v1894
      %v1927 = vadd.f32 %v1863, %v1895
      %v1928 = vadd.f32 %v1864, %v1896
      %v1929 = vadd.f32 %v1865, %v1897
      %v1930 = vadd.f32 %v1866, %v1898
      %v1931 = vadd.f32 %v1867, %v1899
      %v1932 = vadd.f32 %v1868, %v1900
      %v1933 = vadd.f32 %v1869, %v1901
      %v1934 = vadd.f32 %v1870, %v1902
      %1935 = vst [vmem:[#allocation6] sm:$0xff] %v1903
      %1936 = vst [vmem:[#allocation6 + $0x8] sm:$0xff] %v1904
      %1937 = vst [vmem:[#allocation6 + $0x10] sm:$0xff] %v1905
      %1938 = vst [vmem:[#allocation6 + $0x18] sm:$0xff] %v1906
      %1939 = vst [vmem:[#allocation6 + $0x20] sm:$0xff] %v1907
      %1940 = vst [vmem:[#allocation6 + $0x28] sm:$0xff] %v1908
      %1941 = vst [vmem:[#allocation6 + $0x30] sm:$0xff] %v1909
      %1942 = vst [vmem:[#allocation6 + $0x38] sm:$0xff] %v1910
      %1943 = vst [vmem:[#allocation6 + $0x40] sm:$0xff] %v1911
      %1944 = vst [vmem:[#allocation6 + $0x48] sm:$0xff] %v1912
      %1945 = vst [vmem:[#allocation6 + $0x50] sm:$0xff] %v1913
      %1946 = vst [vmem:[#allocation6 + $0x58] sm:$0xff] %v1914
      %1947 = vst [vmem:[#allocation6 + $0x60] sm:$0xff] %v1915
      %1948 = vst [vmem:[#allocation6 + $0x68] sm:$0xff] %v1916
      %1949 = vst [vmem:[#allocation6 + $0x70] sm:$0xff] %v1917
      %1950 = vst [vmem:[#allocation6 + $0x78] sm:$0xff] %v1918
      %1951 = vst [vmem:[#allocation6 + $0x80] sm:$0xff] %v1919
      %1952 = vst [vmem:[#allocation6 + $0x88] sm:$0xff] %v1920
      %1953 = vst [vmem:[#allocation6 + $0x90] sm:$0xff] %v1921
      %1954 = vst [vmem:[#allocation6 + $0x98] sm:$0xff] %v1922
      %1955 = vst [vmem:[#allocation6 + $0xa0] sm:$0xff] %v1923
      %1956 = vst [vmem:[#allocation6 + $0xa8] sm:$0xff] %v1924
      %1957 = vst [vmem:[#allocation6 + $0xb0] sm:$0xff] %v1925
      %1958 = vst [vmem:[#allocation6 + $0xb8] sm:$0xff] %v1926
      %1959 = vst [vmem:[#allocation6 + $0xc0] sm:$0xff] %v1927
      %1960 = vst [vmem:[#allocation6 + $0xc8] sm:$0xff] %v1928
      %1961 = vst [vmem:[#allocation6 + $0xd0] sm:$0xff] %v1929
      %1962 = vst [vmem:[#allocation6 + $0xd8] sm:$0xff] %v1930
      %1963 = vst [vmem:[#allocation6 + $0xe0] sm:$0xff] %v1931
      %1964 = vst [vmem:[#allocation6 + $0xe8] sm:$0xff] %v1932
      %1965 = vst [vmem:[#allocation6 + $0xf0] sm:$0xff] %v1933
      %1966 = vst [vmem:[#allocation6 + $0xf8] sm:$0xff] %v1934
    $region37: #{tpu_custom_call.1} parent=1 // pred_fallthru
      _
    // Predicated region
    $region38: #{tpu_custom_call.1} parent=1 // pred_check
      _
    $region39: #{tpu_custom_call.1} parent=1 // pred_check_branch
      %1968 = sbr.rel (0) target = $region41
    $region40: #{tpu_custom_call.1} parent=1 // pred_region
      %1970 = vsyncadd [#allocation5], 0
      %s1971 = sshll.u32 [#allocation6], 4
      %s1972 = int_to_ptr.vmem [resolvable:$true] %s1971
      %s1973 = sshll.u32 %s6, 4
      %s1974 = int_to_ptr.hbm [resolvable:$true] %s1973
      %1979 = dma.vmem_to_hbm [thread:$0]  %s1972, 4096, %s1974, [#allocation5], 128, 128, 8
    $region41: #{tpu_custom_call.1} parent=1 // pred_fallthru
      _
    // Predicated region
    $region42: #{tpu_custom_call.1} parent=1 // pred_check
      _
    $region43: #{tpu_custom_call.1} parent=1 // pred_check_branch
      %1981 = sbr.rel (0) target = $region45
    $region44: #{tpu_custom_call.1} parent=1 // pred_region
      %1983 = dma.done [#allocation5], 4096
    $region45: #{tpu_custom_call.1} parent=1 // pred_fallthru
      _
    %1984 = vsyncpa [#allocation4], 1
    %1985 = vsyncpa [#allocation5], 1

</llo_original>
